<compile_context>
chip_gen: v5e
topology: v5e:2x2
jax: 0.10.0
libtpu: 0.0.40
codegen_flags: <defaults>
</compile_context>

<pallas_src>
import jax
import jax.numpy as jnp
from jax import lax
from jax.experimental import pallas as pl
from jax.experimental.pallas import tpu as pltpu

MAX_ITER = 10  # fixed-point iterations of the implicit graph block


def _model_kernel(x_ref, adj_t_ref, w_enc_ref, b_enc_ref, w_ig_t_ref,
                  w_dec_ref, out_ref):
    # --- x = F.dropout(x) : identity in eval mode ---------------------------
    # --- h = self.enc(x) : Linear(in -> hidden), node-major [N, H] ----------
    h = jnp.dot(x_ref[...], w_enc_ref[...],
                preferred_element_type=jnp.float32) + b_enc_ref[...]

    adj_t = adj_t_ref[...]     # bf16 [N, N]  (= adj.T, precomputed in wrapper)
    w_ig_t = w_ig_t_ref[...]   # bf16 [H, H]  (= w_ig.T, precomputed in wrapper)

    # --- implicit graph block, node-major fixed point ------------------------
    #   Y_{k+1} = ReLU(A^T @ Y @ W_ig^T + h)     (== transpose of the [H,N] form
    #   Z_{k+1} = ReLU(W_ig @ Z @ A + h^T) used previously; no transposes here)
    # Warm start: the first Picard step from Y=0 is exactly ReLU(h).
    y0 = jnp.maximum(h, 0.0)

    def body(_, y):
        prop = jnp.dot(adj_t, y.astype(adj_t.dtype),
                       preferred_element_type=jnp.float32)           # [N, H]
        lin = jnp.dot(prop.astype(w_ig_t.dtype), w_ig_t,
                      preferred_element_type=jnp.float32)            # [N, H]
        return jnp.maximum(lin + h, 0.0)

    # Short static trip count -> fully unroll for LLO scheduling visibility.
    y = lax.fori_loop(0, MAX_ITER - 1, body, y0, unroll=True)        # [N, H]

    # --- x = self.act(x) : already applied (y >= 0) --------------------------
    # --- x = self.dec(x) : Linear(hidden -> out), no bias --------------------
    out_ref[...] = jnp.dot(y.astype(w_dec_ref.dtype), w_dec_ref[...],
                           preferred_element_type=jnp.float32)       # [N, O]


def _pad_to(arr, target_shape):
    pads = [(0, t - s) for s, t in zip(arr.shape, target_shape)]
    return jnp.pad(arr, pads)


def _round_up(v, m=128):
    return ((v + m - 1) // m) * m


def model_forward(x, adj, w_enc, b_enc, w_ig, w_dec,
                  compute_dtype=jnp.bfloat16):
    n, f = x.shape
    h = w_enc.shape[1]
    o = w_dec.shape[1]
    n_p, f_p, h_p, o_p = _round_up(n), _round_up(f), _round_up(h), _round_up(o)

    # Layout plumbing (plain JAX, outside the kernel): pad lane dims to 128,
    # pre-transpose adj / w_ig, cast MXU operands to bf16.  Zero padding is
    # exact: padded feature columns stay zero through ReLU/matmuls and padded
    # node rows never couple into real rows (adj pad rows/cols are zero).
    x_p = _pad_to(x, (n_p, f_p)).astype(compute_dtype)
    adj_t_p = _pad_to(adj.T, (n_p, n_p)).astype(compute_dtype)
    w_enc_p = _pad_to(w_enc, (f_p, h_p)).astype(compute_dtype)
    b_enc_p = _pad_to(b_enc.reshape(1, -1), (1, h_p)).astype(jnp.float32)
    w_ig_t_p = _pad_to(w_ig.T, (h_p, h_p)).astype(compute_dtype)
    w_dec_p = _pad_to(w_dec, (h_p, o_p)).astype(compute_dtype)

    flops = 2 * (n_p * f_p * h_p
                 + (MAX_ITER - 1) * (n_p * n_p * h_p + n_p * h_p * h_p)
                 + n_p * h_p * o_p)
    bytes_accessed = sum(int(a.size) * a.dtype.itemsize
                         for a in (x_p, adj_t_p, w_enc_p, b_enc_p,
                                   w_ig_t_p, w_dec_p)) + n_p * o_p * 4

    vmem = pl.BlockSpec(memory_space=pltpu.MemorySpace.VMEM)
    out_p = pl.pallas_call(
        _model_kernel,
        out_shape=jax.ShapeDtypeStruct((n_p, o_p), jnp.float32),
        in_specs=[vmem] * 6,
        out_specs=vmem,
        cost_estimate=pl.CostEstimate(flops=flops, transcendentals=0,
                                      bytes_accessed=bytes_accessed),
    )(x_p, adj_t_p, w_enc_p, b_enc_p, w_ig_t_p, w_dec_p)
    return out_p[:n, :o]


if __name__ == "__main__":
    key = jax.random.PRNGKey(0)
    k_x, k_src, k_dst, k_enc, k_b, k_ig, k_dec = jax.random.split(key, 7)

    num_nodes = 32
    in_channels = 16
    hidden_channels = 32
    out_channels = 8
    num_edges = 96

    # Node features.
    x = jax.random.normal(k_x, (num_nodes, in_channels), dtype=jnp.float32)

    # Synthetic edge_index / edge_weight -> dense adjacency (glue, plain JAX).
    # A[dst, src] convention (same as the sparse_coo_tensor in __init__).
    src = jax.random.randint(k_src, (num_edges,), 0, num_nodes)
    dst = jax.random.randint(k_dst, (num_edges,), 0, num_nodes)
    edge_weight = jnp.full((num_edges,), 1.0 / num_nodes, dtype=jnp.float32)
    adj = jnp.zeros((num_nodes, num_nodes), jnp.float32).at[dst, src].add(
        edge_weight)

    # Deterministic parameters (shapes implied by __init__).
    w_enc = (jax.random.normal(k_enc, (in_channels, hidden_channels),
                               dtype=jnp.float32)
             / jnp.sqrt(in_channels))
    b_enc = 0.01 * jax.random.normal(k_b, (1, hidden_channels),
                                     dtype=jnp.float32)
    # Scaled so the fixed-point map is a contraction (monotone operator).
    w_ig = 0.1 * jax.random.normal(k_ig, (hidden_channels, hidden_channels),
                                   dtype=jnp.float32)
    w_dec = (jax.random.normal(k_dec, (hidden_channels, out_channels),
                               dtype=jnp.float32)
             / jnp.sqrt(hidden_channels))

    out = model_forward(x, adj, w_enc, b_enc, w_ig, w_dec)
    jax.block_until_ready(out)
    assert out.shape == (num_nodes, out_channels)
    print("KERNEL_OK")
</pallas_src>

<mosaic_0001>
module attributes {stable_mosaic.version = 11 : i64} {
  func.func @_model_kernel(%arg0: memref<128x128xbf16, #tpu.memory_space<vmem>>, %arg1: memref<128x128xbf16, #tpu.memory_space<vmem>>, %arg2: memref<128x128xbf16, #tpu.memory_space<vmem>>, %arg3: memref<1x128xf32, #tpu.memory_space<vmem>>, %arg4: memref<128x128xbf16, #tpu.memory_space<vmem>>, %arg5: memref<128x128xbf16, #tpu.memory_space<vmem>>, %arg6: memref<128x128xf32, #tpu.memory_space<vmem>>) attributes {dimension_semantics = [], scalar_prefetch = 0 : i64, scratch_operands = 0 : i64, tpu.core_type = #tpu.core_type<tc>} {
    %c0 = arith.constant 0 : index
    %c0_0 = arith.constant 0 : index
    %0 = vector.load %arg0[%c0, %c0_0] : memref<128x128xbf16, #tpu.memory_space<vmem>>, vector<128x128xbf16>
    %c0_1 = arith.constant 0 : index
    %c0_2 = arith.constant 0 : index
    %1 = vector.load %arg2[%c0_1, %c0_2] : memref<128x128xbf16, #tpu.memory_space<vmem>>, vector<128x128xbf16>
    %cst = arith.constant dense<0.000000e+00> : vector<128x128xf32>
    %2 = tpu.matmul %0, %1, %cst {dimension_numbers = #tpu.dot_dimension_numbers<[1], [0], [0], [1], [0, 0, 1, 1], [], []>} : vector<128x128xbf16>, vector<128x128xbf16>, vector<128x128xf32> -> vector<128x128xf32>
    %c0_3 = arith.constant 0 : index
    %c0_4 = arith.constant 0 : index
    %3 = vector.load %arg3[%c0_3, %c0_4] : memref<1x128xf32, #tpu.memory_space<vmem>>, vector<1x128xf32>
    %4 = vector.broadcast %3 : vector<1x128xf32> to vector<128x128xf32>
    %5 = arith.addf %2, %4 : vector<128x128xf32>
    %c0_5 = arith.constant 0 : index
    %c0_6 = arith.constant 0 : index
    %6 = vector.load %arg1[%c0_5, %c0_6] : memref<128x128xbf16, #tpu.memory_space<vmem>>, vector<128x128xbf16>
    %c0_7 = arith.constant 0 : index
    %c0_8 = arith.constant 0 : index
    %7 = vector.load %arg4[%c0_7, %c0_8] : memref<128x128xbf16, #tpu.memory_space<vmem>>, vector<128x128xbf16>
    %cst_9 = arith.constant 0.000000e+00 : f32
    %8 = vector.broadcast %cst_9 : f32 to vector<128x128xf32>
    %9 = arith.maximumf %5, %8 : vector<128x128xf32>
    %c0_i32 = arith.constant 0 : i32
    %10 = arith.truncf %9 : vector<128x128xf32> to vector<128x128xbf16>
    %cst_10 = arith.constant dense<0.000000e+00> : vector<128x128xf32>
    %11 = tpu.matmul %6, %10, %cst_10 {dimension_numbers = #tpu.dot_dimension_numbers<[1], [0], [0], [1], [0, 0, 1, 1], [], []>} : vector<128x128xbf16>, vector<128x128xbf16>, vector<128x128xf32> -> vector<128x128xf32>
    %12 = arith.truncf %11 : vector<128x128xf32> to vector<128x128xbf16>
    %cst_11 = arith.constant dense<0.000000e+00> : vector<128x128xf32>
    %13 = tpu.matmul %12, %7, %cst_11 {dimension_numbers = #tpu.dot_dimension_numbers<[1], [0], [0], [1], [0, 0, 1, 1], [], []>} : vector<128x128xbf16>, vector<128x128xbf16>, vector<128x128xf32> -> vector<128x128xf32>
    %14 = arith.addf %13, %5 : vector<128x128xf32>
    %cst_12 = arith.constant 0.000000e+00 : f32
    %15 = vector.broadcast %cst_12 : f32 to vector<128x128xf32>
    %16 = arith.maximumf %14, %15 : vector<128x128xf32>
    %c1_i32 = arith.constant 1 : i32
    %17 = arith.truncf %16 : vector<128x128xf32> to vector<128x128xbf16>
    %cst_13 = arith.constant dense<0.000000e+00> : vector<128x128xf32>
    %18 = tpu.matmul %6, %17, %cst_13 {dimension_numbers = #tpu.dot_dimension_numbers<[1], [0], [0], [1], [0, 0, 1, 1], [], []>} : vector<128x128xbf16>, vector<128x128xbf16>, vector<128x128xf32> -> vector<128x128xf32>
    %19 = arith.truncf %18 : vector<128x128xf32> to vector<128x128xbf16>
    %cst_14 = arith.constant dense<0.000000e+00> : vector<128x128xf32>
    %20 = tpu.matmul %19, %7, %cst_14 {dimension_numbers = #tpu.dot_dimension_numbers<[1], [0], [0], [1], [0, 0, 1, 1], [], []>} : vector<128x128xbf16>, vector<128x128xbf16>, vector<128x128xf32> -> vector<128x128xf32>
    %21 = arith.addf %20, %5 : vector<128x128xf32>
    %cst_15 = arith.constant 0.000000e+00 : f32
    %22 = vector.broadcast %cst_15 : f32 to vector<128x128xf32>
    %23 = arith.maximumf %21, %22 : vector<128x128xf32>
    %c2_i32 = arith.constant 2 : i32
    %24 = arith.truncf %23 : vector<128x128xf32> to vector<128x128xbf16>
    %cst_16 = arith.constant dense<0.000000e+00> : vector<128x128xf32>
    %25 = tpu.matmul %6, %24, %cst_16 {dimension_numbers = #tpu.dot_dimension_numbers<[1], [0], [0], [1], [0, 0, 1, 1], [], []>} : vector<128x128xbf16>, vector<128x128xbf16>, vector<128x128xf32> -> vector<128x128xf32>
    %26 = arith.truncf %25 : vector<128x128xf32> to vector<128x128xbf16>
    %cst_17 = arith.constant dense<0.000000e+00> : vector<128x128xf32>
    %27 = tpu.matmul %26, %7, %cst_17 {dimension_numbers = #tpu.dot_dimension_numbers<[1], [0], [0], [1], [0, 0, 1, 1], [], []>} : vector<128x128xbf16>, vector<128x128xbf16>, vector<128x128xf32> -> vector<128x128xf32>
    %28 = arith.addf %27, %5 : vector<128x128xf32>
    %cst_18 = arith.constant 0.000000e+00 : f32
    %29 = vector.broadcast %cst_18 : f32 to vector<128x128xf32>
    %30 = arith.maximumf %28, %29 : vector<128x128xf32>
    %c3_i32 = arith.constant 3 : i32
    %31 = arith.truncf %30 : vector<128x128xf32> to vector<128x128xbf16>
    %cst_19 = arith.constant dense<0.000000e+00> : vector<128x128xf32>
    %32 = tpu.matmul %6, %31, %cst_19 {dimension_numbers = #tpu.dot_dimension_numbers<[1], [0], [0], [1], [0, 0, 1, 1], [], []>} : vector<128x128xbf16>, vector<128x128xbf16>, vector<128x128xf32> -> vector<128x128xf32>
    %33 = arith.truncf %32 : vector<128x128xf32> to vector<128x128xbf16>
    %cst_20 = arith.constant dense<0.000000e+00> : vector<128x128xf32>
    %34 = tpu.matmul %33, %7, %cst_20 {dimension_numbers = #tpu.dot_dimension_numbers<[1], [0], [0], [1], [0, 0, 1, 1], [], []>} : vector<128x128xbf16>, vector<128x128xbf16>, vector<128x128xf32> -> vector<128x128xf32>
    %35 = arith.addf %34, %5 : vector<128x128xf32>
    %cst_21 = arith.constant 0.000000e+00 : f32
    %36 = vector.broadcast %cst_21 : f32 to vector<128x128xf32>
    %37 = arith.maximumf %35, %36 : vector<128x128xf32>
    %c4_i32 = arith.constant 4 : i32
    %38 = arith.truncf %37 : vector<128x128xf32> to vector<128x128xbf16>
    %cst_22 = arith.constant dense<0.000000e+00> : vector<128x128xf32>
    %39 = tpu.matmul %6, %38, %cst_22 {dimension_numbers = #tpu.dot_dimension_numbers<[1], [0], [0], [1], [0, 0, 1, 1], [], []>} : vector<128x128xbf16>, vector<128x128xbf16>, vector<128x128xf32> -> vector<128x128xf32>
    %40 = arith.truncf %39 : vector<128x128xf32> to vector<128x128xbf16>
    %cst_23 = arith.constant dense<0.000000e+00> : vector<128x128xf32>
    %41 = tpu.matmul %40, %7, %cst_23 {dimension_numbers = #tpu.dot_dimension_numbers<[1], [0], [0], [1], [0, 0, 1, 1], [], []>} : vector<128x128xbf16>, vector<128x128xbf16>, vector<128x128xf32> -> vector<128x128xf32>
    %42 = arith.addf %41, %5 : vector<128x128xf32>
    %cst_24 = arith.constant 0.000000e+00 : f32
    %43 = vector.broadcast %cst_24 : f32 to vector<128x128xf32>
    %44 = arith.maximumf %42, %43 : vector<128x128xf32>
    %c5_i32 = arith.constant 5 : i32
    %45 = arith.truncf %44 : vector<128x128xf32> to vector<128x128xbf16>
    %cst_25 = arith.constant dense<0.000000e+00> : vector<128x128xf32>
    %46 = tpu.matmul %6, %45, %cst_25 {dimension_numbers = #tpu.dot_dimension_numbers<[1], [0], [0], [1], [0, 0, 1, 1], [], []>} : vector<128x128xbf16>, vector<128x128xbf16>, vector<128x128xf32> -> vector<128x128xf32>
    %47 = arith.truncf %46 : vector<128x128xf32> to vector<128x128xbf16>
    %cst_26 = arith.constant dense<0.000000e+00> : vector<128x128xf32>
    %48 = tpu.matmul %47, %7, %cst_26 {dimension_numbers = #tpu.dot_dimension_numbers<[1], [0], [0], [1], [0, 0, 1, 1], [], []>} : vector<128x128xbf16>, vector<128x128xbf16>, vector<128x128xf32> -> vector<128x128xf32>
    %49 = arith.addf %48, %5 : vector<128x128xf32>
    %cst_27 = arith.constant 0.000000e+00 : f32
    %50 = vector.broadcast %cst_27 : f32 to vector<128x128xf32>
    %51 = arith.maximumf %49, %50 : vector<128x128xf32>
    %c6_i32 = arith.constant 6 : i32
    %52 = arith.truncf %51 : vector<128x128xf32> to vector<128x128xbf16>
    %cst_28 = arith.constant dense<0.000000e+00> : vector<128x128xf32>
    %53 = tpu.matmul %6, %52, %cst_28 {dimension_numbers = #tpu.dot_dimension_numbers<[1], [0], [0], [1], [0, 0, 1, 1], [], []>} : vector<128x128xbf16>, vector<128x128xbf16>, vector<128x128xf32> -> vector<128x128xf32>
    %54 = arith.truncf %53 : vector<128x128xf32> to vector<128x128xbf16>
    %cst_29 = arith.constant dense<0.000000e+00> : vector<128x128xf32>
    %55 = tpu.matmul %54, %7, %cst_29 {dimension_numbers = #tpu.dot_dimension_numbers<[1], [0], [0], [1], [0, 0, 1, 1], [], []>} : vector<128x128xbf16>, vector<128x128xbf16>, vector<128x128xf32> -> vector<128x128xf32>
    %56 = arith.addf %55, %5 : vector<128x128xf32>
    %cst_30 = arith.constant 0.000000e+00 : f32
    %57 = vector.broadcast %cst_30 : f32 to vector<128x128xf32>
    %58 = arith.maximumf %56, %57 : vector<128x128xf32>
    %c7_i32 = arith.constant 7 : i32
    %59 = arith.truncf %58 : vector<128x128xf32> to vector<128x128xbf16>
    %cst_31 = arith.constant dense<0.000000e+00> : vector<128x128xf32>
    %60 = tpu.matmul %6, %59, %cst_31 {dimension_numbers = #tpu.dot_dimension_numbers<[1], [0], [0], [1], [0, 0, 1, 1], [], []>} : vector<128x128xbf16>, vector<128x128xbf16>, vector<128x128xf32> -> vector<128x128xf32>
    %61 = arith.truncf %60 : vector<128x128xf32> to vector<128x128xbf16>
    %cst_32 = arith.constant dense<0.000000e+00> : vector<128x128xf32>
    %62 = tpu.matmul %61, %7, %cst_32 {dimension_numbers = #tpu.dot_dimension_numbers<[1], [0], [0], [1], [0, 0, 1, 1], [], []>} : vector<128x128xbf16>, vector<128x128xbf16>, vector<128x128xf32> -> vector<128x128xf32>
    %63 = arith.addf %62, %5 : vector<128x128xf32>
    %cst_33 = arith.constant 0.000000e+00 : f32
    %64 = vector.broadcast %cst_33 : f32 to vector<128x128xf32>
    %65 = arith.maximumf %63, %64 : vector<128x128xf32>
    %c8_i32 = arith.constant 8 : i32
    %66 = arith.truncf %65 : vector<128x128xf32> to vector<128x128xbf16>
    %cst_34 = arith.constant dense<0.000000e+00> : vector<128x128xf32>
    %67 = tpu.matmul %6, %66, %cst_34 {dimension_numbers = #tpu.dot_dimension_numbers<[1], [0], [0], [1], [0, 0, 1, 1], [], []>} : vector<128x128xbf16>, vector<128x128xbf16>, vector<128x128xf32> -> vector<128x128xf32>
    %68 = arith.truncf %67 : vector<128x128xf32> to vector<128x128xbf16>
    %cst_35 = arith.constant dense<0.000000e+00> : vector<128x128xf32>
    %69 = tpu.matmul %68, %7, %cst_35 {dimension_numbers = #tpu.dot_dimension_numbers<[1], [0], [0], [1], [0, 0, 1, 1], [], []>} : vector<128x128xbf16>, vector<128x128xbf16>, vector<128x128xf32> -> vector<128x128xf32>
    %70 = arith.addf %69, %5 : vector<128x128xf32>
    %cst_36 = arith.constant 0.000000e+00 : f32
    %71 = vector.broadcast %cst_36 : f32 to vector<128x128xf32>
    %72 = arith.maximumf %70, %71 : vector<128x128xf32>
    %73 = arith.truncf %72 : vector<128x128xf32> to vector<128x128xbf16>
    %c0_37 = arith.constant 0 : index
    %c0_38 = arith.constant 0 : index
    %74 = vector.load %arg5[%c0_37, %c0_38] : memref<128x128xbf16, #tpu.memory_space<vmem>>, vector<128x128xbf16>
    %cst_39 = arith.constant dense<0.000000e+00> : vector<128x128xf32>
    %75 = tpu.matmul %73, %74, %cst_39 {dimension_numbers = #tpu.dot_dimension_numbers<[1], [0], [0], [1], [0, 0, 1, 1], [], []>} : vector<128x128xbf16>, vector<128x128xbf16>, vector<128x128xf32> -> vector<128x128xf32>
    %c0_40 = arith.constant 0 : index
    %c0_41 = arith.constant 0 : index
    %76 = vector.load %arg6[%c0_40, %c0_41] : memref<128x128xf32, #tpu.memory_space<vmem>>, vector<128x128xf32>
    tpu.vector_store %arg6[%c0_40, %c0_41], %75 {strides = array<i32>} : memref<128x128xf32, #tpu.memory_space<vmem>>, vector<128x128xf32>,
    return
  }
}

</mosaic_0001>

<llo_original>
// kernel: tpu_custom_call.1
$region0: #{tpu_custom_call.1}
  #allocation0 [shape = 'u32[]', space=smem, size = 0x4, offset = 0x4, fixed_abs, tag = 'smem constant byte address 0x4 - core index']
  #allocation1 [shape = 'u32[72,128]{1,0:T(1,128)}', space=vmem, size = 0x9000, scoped, tag = 'internal scratch']
  %s0 = inlined_call_operand.hbm [shape: bf16[128,128], index: 0, kind: input, shape index: {}]
  %s1 = inlined_call_operand.hbm [shape: bf16[128,128], index: 1, kind: input, shape index: {}]
  %s2 = inlined_call_operand.hbm [shape: bf16[128,128], index: 2, kind: input, shape index: {}]
  %s3 = inlined_call_operand.vmem [shape: f32[1,128], index: 3, kind: input, shape index: {}]
  %s4 = inlined_call_operand.hbm [shape: bf16[128,128], index: 4, kind: input, shape index: {}]
  %s5 = inlined_call_operand.hbm [shape: bf16[128,128], index: 5, kind: input, shape index: {}]
  %s6 = inlined_call_operand.hbm [shape: f32[128,128], index: 6, kind: output, shape index: {}]
  %s7 = sld [smem:[#allocation0]]
  $region54: #{tpu_custom_call.1} parent=0
    _
  %s9 = ssub.s32 1, %s7
  %s10 = scalar_select 0, %s9, %s7
  $region1: #{tpu_custom_call.1} parent=0
    #allocation2 [shape = 'u8[32768]{0}', space=vmem, size = 0x8000, scoped, tag = 'input window, operand 0, single buffered']
    #allocation3 [shape = 's32[1]{0}', space=sflag, size = 0x4, scoped, tag = 'scoped memory for tpu_custom_call.1']
    #allocation4 [shape = 's32[1]{0}', space=sflag, size = 0x4, scoped, tag = 'scoped memory for tpu_custom_call.1']
    #allocation5 [shape = 'u8[32768]{0}', space=vmem, size = 0x8000, scoped, tag = 'input window, operand 1, single buffered']
    #allocation6 [shape = 's32[1]{0}', space=sflag, size = 0x4, scoped, tag = 'scoped memory for tpu_custom_call.1']
    #allocation7 [shape = 'u8[32768]{0}', space=vmem, size = 0x8000, scoped, tag = 'input window, operand 2, single buffered']
    #allocation8 [shape = 'u8[32768]{0}', space=vmem, size = 0x8000, scoped, tag = 'input window, operand 4, single buffered']
    #allocation9 [shape = 's32[1]{0}', space=sflag, size = 0x4, scoped, tag = 'scoped memory for tpu_custom_call.1']
    #allocation10 [shape = 'u8[32768]{0}', space=vmem, size = 0x8000, scoped, tag = 'input window, operand 5, single buffered']
    #allocation11 [shape = 'u8[65536]{0}', space=vmem, size = 0x10000, scoped, tag = 'output window, operand 0, single buffered']
    %11 = vsyncpa [#allocation3], 0
    %12 = vsyncpa [#allocation6], 0
    %13 = vsyncpa [#allocation9], 0
    %14 = vsyncpa [#allocation4], 0
    // Predicated region
    $region2: #{tpu_custom_call.1} parent=1 // pred_check
      _
    $region3: #{tpu_custom_call.1} parent=1 // pred_check_branch
      %16 = sbr.rel (0) target = $region5
    $region4: #{tpu_custom_call.1} parent=1 // pred_region
      %18 = vsyncadd [#allocation3], 0
      %s19 = sshll.u32 %s0, 4
      %s20 = int_to_ptr.hbm [resolvable:$true] %s19
      %s21 = sshll.u32 [#allocation2], 4
      %s22 = int_to_ptr.vmem [resolvable:$true] %s21
      %27 = dma.hbm_to_vmem [thread:$0]  %s20, 1024, %s22, [#allocation3], 64, 64, 4
    $region5: #{tpu_custom_call.1} parent=1 // pred_fallthru
      _
    // Predicated region
    $region6: #{tpu_custom_call.1} parent=1 // pred_check
      _
    $region7: #{tpu_custom_call.1} parent=1 // pred_check_branch
      %29 = sbr.rel (0) target = $region9
    $region8: #{tpu_custom_call.1} parent=1 // pred_region
      %31 = vsyncadd [#allocation6], 0
      %s32 = sshll.u32 %s1, 4
      %s33 = int_to_ptr.hbm [resolvable:$true] %s32
      %s34 = sshll.u32 [#allocation5], 4
      %s35 = int_to_ptr.vmem [resolvable:$true] %s34
      %40 = dma.hbm_to_vmem [thread:$0]  %s33, 1024, %s35, [#allocation6], 64, 64, 4
    $region9: #{tpu_custom_call.1} parent=1 // pred_fallthru
      _
    // Predicated region
    $region10: #{tpu_custom_call.1} parent=1 // pred_check
      _
    $region11: #{tpu_custom_call.1} parent=1 // pred_check_branch
      %42 = sbr.rel (0) target = $region13
    $region12: #{tpu_custom_call.1} parent=1 // pred_region
      %44 = vsyncadd [#allocation6], 0
      %s45 = sshll.u32 %s2, 4
      %s46 = int_to_ptr.hbm [resolvable:$true] %s45
      %s47 = sshll.u32 [#allocation7], 4
      %s48 = int_to_ptr.vmem [resolvable:$true] %s47
      %53 = dma.hbm_to_vmem [thread:$0]  %s46, 1024, %s48, [#allocation6], 64, 64, 4
    $region13: #{tpu_custom_call.1} parent=1 // pred_fallthru
      _
    // Predicated region
    $region14: #{tpu_custom_call.1} parent=1 // pred_check
      _
    $region15: #{tpu_custom_call.1} parent=1 // pred_check_branch
      %55 = sbr.rel (0) target = $region17
    $region16: #{tpu_custom_call.1} parent=1 // pred_region
      _
    $region17: #{tpu_custom_call.1} parent=1 // pred_fallthru
      _
    // Predicated region
    $region18: #{tpu_custom_call.1} parent=1 // pred_check
      _
    $region19: #{tpu_custom_call.1} parent=1 // pred_check_branch
      %57 = sbr.rel (0) target = $region21
    $region20: #{tpu_custom_call.1} parent=1 // pred_region
      %59 = vsyncadd [#allocation9], 0
      %s60 = sshll.u32 %s4, 4
      %s61 = int_to_ptr.hbm [resolvable:$true] %s60
      %s62 = sshll.u32 [#allocation8], 4
      %s63 = int_to_ptr.vmem [resolvable:$true] %s62
      %68 = dma.hbm_to_vmem [thread:$0]  %s61, 1024, %s63, [#allocation9], 64, 64, 4
    $region21: #{tpu_custom_call.1} parent=1 // pred_fallthru
      _
    // Predicated region
    $region22: #{tpu_custom_call.1} parent=1 // pred_check
      _
    $region23: #{tpu_custom_call.1} parent=1 // pred_check_branch
      %70 = sbr.rel (0) target = $region25
    $region24: #{tpu_custom_call.1} parent=1 // pred_region
      %72 = vsyncadd [#allocation9], 0
      %s73 = sshll.u32 %s5, 4
      %s74 = int_to_ptr.hbm [resolvable:$true] %s73
      %s75 = sshll.u32 [#allocation10], 4
      %s76 = int_to_ptr.vmem [resolvable:$true] %s75
      %81 = dma.hbm_to_vmem [thread:$0]  %s74, 1024, %s76, [#allocation9], 64, 64, 4
    $region25: #{tpu_custom_call.1} parent=1 // pred_fallthru
      _
    // Predicated region
    $region26: #{tpu_custom_call.1} parent=1 // pred_check
      _
    $region27: #{tpu_custom_call.1} parent=1 // pred_check_branch
      %83 = sbr.rel (0) target = $region29
    $region28: #{tpu_custom_call.1} parent=1 // pred_region
      %85 = dma.done [#allocation3], 1024
    $region29: #{tpu_custom_call.1} parent=1 // pred_fallthru
      _
    // Predicated region
    $region30: #{tpu_custom_call.1} parent=1 // pred_check
      _
    $region31: #{tpu_custom_call.1} parent=1 // pred_check_branch
      %87 = sbr.rel (0) target = $region33
    $region32: #{tpu_custom_call.1} parent=1 // pred_region
      %89 = dma.done [#allocation6], 1024
    $region33: #{tpu_custom_call.1} parent=1 // pred_fallthru
      _
    // Predicated region
    $region34: #{tpu_custom_call.1} parent=1 // pred_check
      _
    $region35: #{tpu_custom_call.1} parent=1 // pred_check_branch
      %91 = sbr.rel (0) target = $region37
    $region36: #{tpu_custom_call.1} parent=1 // pred_region
      %93 = dma.done [#allocation6], 1024
    $region37: #{tpu_custom_call.1} parent=1 // pred_fallthru
      _
    // Predicated region
    $region38: #{tpu_custom_call.1} parent=1 // pred_check
      _
    $region39: #{tpu_custom_call.1} parent=1 // pred_check_branch
      %95 = sbr.rel (0) target = $region41
    $region40: #{tpu_custom_call.1} parent=1 // pred_region
      %97 = dma.done [#allocation9], 1024
    $region41: #{tpu_custom_call.1} parent=1 // pred_fallthru
      _
    // Predicated region
    $region42: #{tpu_custom_call.1} parent=1 // pred_check
      _
    $region43: #{tpu_custom_call.1} parent=1 // pred_check_branch
      %99 = sbr.rel (0) target = $region45
    $region44: #{tpu_custom_call.1} parent=1 // pred_region
      %101 = dma.done [#allocation9], 1024
    $region45: #{tpu_custom_call.1} parent=1 // pred_fallthru
      _
    %v102 = vld [vmem:[#allocation2] sm:$0xf]
    %v103 = vld [vmem:[#allocation2 + $0x4] sm:$0xf]
    %v104 = vld [vmem:[#allocation2 + $0x8] sm:$0xf]
    %v105 = vld [vmem:[#allocation2 + $0xc] sm:$0xf]
    %v106 = vld [vmem:[#allocation2 + $0x10] sm:$0xf]
    %v107 = vld [vmem:[#allocation2 + $0x14] sm:$0xf]
    %v108 = vld [vmem:[#allocation2 + $0x18] sm:$0xf]
    %v109 = vld [vmem:[#allocation2 + $0x1c] sm:$0xf]
    %v110 = vld [vmem:[#allocation2 + $0x20] sm:$0xf]
    %v111 = vld [vmem:[#allocation2 + $0x24] sm:$0xf]
    %v112 = vld [vmem:[#allocation2 + $0x28] sm:$0xf]
    %v113 = vld [vmem:[#allocation2 + $0x2c] sm:$0xf]
    %v114 = vld [vmem:[#allocation2 + $0x30] sm:$0xf]
    %v115 = vld [vmem:[#allocation2 + $0x34] sm:$0xf]
    %v116 = vld [vmem:[#allocation2 + $0x38] sm:$0xf]
    %v117 = vld [vmem:[#allocation2 + $0x3c] sm:$0xf]
    %v118 = vld [vmem:[#allocation7] sm:$0xf]
    %v119 = vld [vmem:[#allocation7 + $0x4] sm:$0xf]
    %v120 = vld [vmem:[#allocation7 + $0x8] sm:$0xf]
    %v121 = vld [vmem:[#allocation7 + $0xc] sm:$0xf]
    %v122 = vld [vmem:[#allocation7 + $0x10] sm:$0xf]
    %v123 = vld [vmem:[#allocation7 + $0x14] sm:$0xf]
    %v124 = vld [vmem:[#allocation7 + $0x18] sm:$0xf]
    %v125 = vld [vmem:[#allocation7 + $0x1c] sm:$0xf]
    %v126 = vld [vmem:[#allocation7 + $0x20] sm:$0xf]
    %v127 = vld [vmem:[#allocation7 + $0x24] sm:$0xf]
    %v128 = vld [vmem:[#allocation7 + $0x28] sm:$0xf]
    %v129 = vld [vmem:[#allocation7 + $0x2c] sm:$0xf]
    %v130 = vld [vmem:[#allocation7 + $0x30] sm:$0xf]
    %v131 = vld [vmem:[#allocation7 + $0x34] sm:$0xf]
    %v132 = vld [vmem:[#allocation7 + $0x38] sm:$0xf]
    %v133 = vld [vmem:[#allocation7 + $0x3c] sm:$0xf]
    %v134 = vld [vmem:[%s3] sm:$0x1]
    %v136 = vperm.slane %v134, 0
    %v154 = vunpack.c.l.b16 %v102
    %v155 = vunpack.c.l.b16 %v103
    %v156 = vunpack.c.l.b16 %v104
    %v157 = vunpack.c.l.b16 %v105
    %v158 = vunpack.c.l.b16 %v106
    %v159 = vunpack.c.l.b16 %v107
    %v160 = vunpack.c.l.b16 %v108
    %v161 = vunpack.c.l.b16 %v109
    %v162 = vunpack.c.l.b16 %v110
    %v163 = vunpack.c.l.b16 %v111
    %v164 = vunpack.c.l.b16 %v112
    %v165 = vunpack.c.l.b16 %v113
    %v166 = vunpack.c.l.b16 %v114
    %v167 = vunpack.c.l.b16 %v115
    %v168 = vunpack.c.l.b16 %v116
    %v169 = vunpack.c.l.b16 %v117
    %v170 = vpack.c.b16 %v155, %v154
    %v171 = vpack.c.b16 %v157, %v156
    %v172 = vpack.c.b16 %v159, %v158
    %v173 = vpack.c.b16 %v161, %v160
    %v174 = vpack.c.b16 %v163, %v162
    %v175 = vpack.c.b16 %v165, %v164
    %v176 = vpack.c.b16 %v167, %v166
    %v177 = vpack.c.b16 %v169, %v168
    %v202 = vunpack.c.l.b16 %v118
    %v203 = vunpack.c.l.b16 %v119
    %v204 = vunpack.c.l.b16 %v120
    %v205 = vunpack.c.l.b16 %v121
    %v206 = vunpack.c.l.b16 %v122
    %v207 = vunpack.c.l.b16 %v123
    %v208 = vunpack.c.l.b16 %v124
    %v209 = vunpack.c.l.b16 %v125
    %v210 = vunpack.c.l.b16 %v126
    %v211 = vunpack.c.l.b16 %v127
    %v212 = vunpack.c.l.b16 %v128
    %v213 = vunpack.c.l.b16 %v129
    %v214 = vunpack.c.l.b16 %v130
    %v215 = vunpack.c.l.b16 %v131
    %v216 = vunpack.c.l.b16 %v132
    %v217 = vunpack.c.l.b16 %v133
    %v218 = vpack.c.b16 %v203, %v202
    %v219 = vpack.c.b16 %v205, %v204
    %v220 = vpack.c.b16 %v207, %v206
    %v221 = vpack.c.b16 %v209, %v208
    %v222 = vpack.c.b16 %v211, %v210
    %v223 = vpack.c.b16 %v213, %v212
    %v224 = vpack.c.b16 %v215, %v214
    %v225 = vpack.c.b16 %v217, %v216
    %234 = vmatpush.bf16.msra.mxu0 %v225
    %235 = vmatpush.bf16.msra.mxu0 %v224
    %236 = vmatpush.bf16.msra.mxu0 %v223
    %237 = vmatpush.bf16.msra.mxu0 %v222
    %238 = vmatpush.bf16.msra.mxu0 %v221
    %239 = vmatpush.bf16.msra.mxu0 %v220
    %240 = vmatpush.bf16.msra.mxu0 %v219
    %241 = vmatpush.bf16.msra.mxu0 %v218
    %242 = vmatmul.bf16.gmra.mxu0 %v170
    %v243 = vpop.f32.mrf.mxu0
    %v244 = vadd.f32 %v136, %v243
    %v245 = vpop.f32.mrf.mxu0
    %v246 = vadd.f32 %v136, %v245
    %247 = vmatmul.bf16.gmra.mxu0 %v171
    %v248 = vpop.f32.mrf.mxu0
    %v249 = vadd.f32 %v136, %v248
    %v250 = vpop.f32.mrf.mxu0
    %v251 = vadd.f32 %v136, %v250
    %252 = vmatmul.bf16.gmra.mxu0 %v172
    %v253 = vpop.f32.mrf.mxu0
    %v254 = vadd.f32 %v136, %v253
    %v255 = vpop.f32.mrf.mxu0
    %v256 = vadd.f32 %v136, %v255
    %257 = vmatmul.bf16.gmra.mxu0 %v173
    %v258 = vpop.f32.mrf.mxu0
    %v259 = vadd.f32 %v136, %v258
    %v260 = vpop.f32.mrf.mxu0
    %v261 = vadd.f32 %v136, %v260
    %262 = vmatmul.bf16.gmra.mxu0 %v174
    %v263 = vpop.f32.mrf.mxu0
    %v264 = vadd.f32 %v136, %v263
    %v265 = vpop.f32.mrf.mxu0
    %v266 = vadd.f32 %v136, %v265
    %267 = vmatmul.bf16.gmra.mxu0 %v175
    %v268 = vpop.f32.mrf.mxu0
    %v269 = vadd.f32 %v136, %v268
    %v270 = vpop.f32.mrf.mxu0
    %v271 = vadd.f32 %v136, %v270
    %272 = vmatmul.bf16.gmra.mxu0 %v176
    %v273 = vpop.f32.mrf.mxu0
    %v274 = vadd.f32 %v136, %v273
    %v275 = vpop.f32.mrf.mxu0
    %v276 = vadd.f32 %v136, %v275
    %277 = vmatmul.bf16.gmra.mxu0 %v177
    %v278 = vpop.f32.mrf.mxu0
    %v279 = vadd.f32 %v136, %v278
    %v280 = vpop.f32.mrf.mxu0
    %v281 = vadd.f32 %v136, %v280
    %282 = vdwg.mxu0
    %v283 = vld [vmem:[#allocation5] sm:$0xf]
    %v284 = vld [vmem:[#allocation5 + $0x4] sm:$0xf]
    %v285 = vld [vmem:[#allocation5 + $0x8] sm:$0xf]
    %v286 = vld [vmem:[#allocation5 + $0xc] sm:$0xf]
    %v287 = vld [vmem:[#allocation5 + $0x10] sm:$0xf]
    %v288 = vld [vmem:[#allocation5 + $0x14] sm:$0xf]
    %v289 = vld [vmem:[#allocation5 + $0x18] sm:$0xf]
    %v290 = vld [vmem:[#allocation5 + $0x1c] sm:$0xf]
    %v291 = vld [vmem:[#allocation5 + $0x20] sm:$0xf]
    %v292 = vld [vmem:[#allocation5 + $0x24] sm:$0xf]
    %v293 = vld [vmem:[#allocation5 + $0x28] sm:$0xf]
    %v294 = vld [vmem:[#allocation5 + $0x2c] sm:$0xf]
    %v295 = vld [vmem:[#allocation5 + $0x30] sm:$0xf]
    %v296 = vld [vmem:[#allocation5 + $0x34] sm:$0xf]
    %v297 = vld [vmem:[#allocation5 + $0x38] sm:$0xf]
    %v298 = vld [vmem:[#allocation5 + $0x3c] sm:$0xf]
    %v299 = vld [vmem:[#allocation8] sm:$0xf]
    %v300 = vld [vmem:[#allocation8 + $0x4] sm:$0xf]
    %v301 = vld [vmem:[#allocation8 + $0x8] sm:$0xf]
    %v302 = vld [vmem:[#allocation8 + $0xc] sm:$0xf]
    %v303 = vld [vmem:[#allocation8 + $0x10] sm:$0xf]
    %v304 = vld [vmem:[#allocation8 + $0x14] sm:$0xf]
    %v305 = vld [vmem:[#allocation8 + $0x18] sm:$0xf]
    %v306 = vld [vmem:[#allocation8 + $0x1c] sm:$0xf]
    %v307 = vld [vmem:[#allocation8 + $0x20] sm:$0xf]
    %v308 = vld [vmem:[#allocation8 + $0x24] sm:$0xf]
    %v309 = vld [vmem:[#allocation8 + $0x28] sm:$0xf]
    %v310 = vld [vmem:[#allocation8 + $0x2c] sm:$0xf]
    %v311 = vld [vmem:[#allocation8 + $0x30] sm:$0xf]
    %v312 = vld [vmem:[#allocation8 + $0x34] sm:$0xf]
    %v313 = vld [vmem:[#allocation8 + $0x38] sm:$0xf]
    %v314 = vld [vmem:[#allocation8 + $0x3c] sm:$0xf]
    %v315 = vmax.f32 %v244, 0.0
    %v316 = vmax.f32 %v246, 0.0
    %v317 = vmax.f32 %v249, 0.0
    %v318 = vmax.f32 %v251, 0.0
    %v319 = vmax.f32 %v254, 0.0
    %v320 = vmax.f32 %v256, 0.0
    %v321 = vmax.f32 %v259, 0.0
    %v322 = vmax.f32 %v261, 0.0
    %v323 = vmax.f32 %v264, 0.0
    %v324 = vmax.f32 %v266, 0.0
    %v325 = vmax.f32 %v269, 0.0
    %v326 = vmax.f32 %v271, 0.0
    %v327 = vmax.f32 %v274, 0.0
    %v328 = vmax.f32 %v276, 0.0
    %v329 = vmax.f32 %v279, 0.0
    %v330 = vmax.f32 %v281, 0.0
    %v331 = vpack.c.bf16 %v316, %v315
    %v332 = vpack.c.bf16 %v318, %v317
    %v333 = vpack.c.bf16 %v320, %v319
    %v334 = vpack.c.bf16 %v322, %v321
    %v335 = vpack.c.bf16 %v324, %v323
    %v336 = vpack.c.bf16 %v326, %v325
    %v337 = vpack.c.bf16 %v328, %v327
    %v338 = vpack.c.bf16 %v330, %v329
    %v355 = vunpack.c.l.b16 %v283
    %v356 = vunpack.c.l.b16 %v284
    %v357 = vunpack.c.l.b16 %v285
    %v358 = vunpack.c.l.b16 %v286
    %v359 = vunpack.c.l.b16 %v287
    %v360 = vunpack.c.l.b16 %v288
    %v361 = vunpack.c.l.b16 %v289
    %v362 = vunpack.c.l.b16 %v290
    %v363 = vunpack.c.l.b16 %v291
    %v364 = vunpack.c.l.b16 %v292
    %v365 = vunpack.c.l.b16 %v293
    %v366 = vunpack.c.l.b16 %v294
    %v367 = vunpack.c.l.b16 %v295
    %v368 = vunpack.c.l.b16 %v296
    %v369 = vunpack.c.l.b16 %v297
    %v370 = vunpack.c.l.b16 %v298
    %v371 = vpack.c.b16 %v356, %v355
    %v372 = vpack.c.b16 %v358, %v357
    %v373 = vpack.c.b16 %v360, %v359
    %v374 = vpack.c.b16 %v362, %v361
    %v375 = vpack.c.b16 %v364, %v363
    %v376 = vpack.c.b16 %v366, %v365
    %v377 = vpack.c.b16 %v368, %v367
    %v378 = vpack.c.b16 %v370, %v369
    %387 = vmatpush.bf16.msra.mxu0 %v338
    %388 = vmatpush.bf16.msra.mxu0 %v337
    %389 = vmatpush.bf16.msra.mxu0 %v336
    %390 = vmatpush.bf16.msra.mxu0 %v335
    %391 = vmatpush.bf16.msra.mxu0 %v334
    %392 = vmatpush.bf16.msra.mxu0 %v333
    %393 = vmatpush.bf16.msra.mxu0 %v332
    %394 = vmatpush.bf16.msra.mxu0 %v331
    %395 = vmatmul.bf16.gmra.mxu0 %v371
    %v396 = vpop.f32.mrf.mxu0
    %v397 = vadd.f32 0.0, %v396
    %v398 = vpop.f32.mrf.mxu0
    %v399 = vadd.f32 0.0, %v398
    %400 = vmatmul.bf16.gmra.mxu0 %v372
    %v401 = vpop.f32.mrf.mxu0
    %v402 = vadd.f32 0.0, %v401
    %v403 = vpop.f32.mrf.mxu0
    %v404 = vadd.f32 0.0, %v403
    %405 = vmatmul.bf16.gmra.mxu0 %v373
    %v406 = vpop.f32.mrf.mxu0
    %v407 = vadd.f32 0.0, %v406
    %v408 = vpop.f32.mrf.mxu0
    %v409 = vadd.f32 0.0, %v408
    %410 = vmatmul.bf16.gmra.mxu0 %v374
    %v411 = vpop.f32.mrf.mxu0
    %v412 = vadd.f32 0.0, %v411
    %v413 = vpop.f32.mrf.mxu0
    %v414 = vadd.f32 0.0, %v413
    %415 = vmatmul.bf16.gmra.mxu0 %v375
    %v416 = vpop.f32.mrf.mxu0
    %v417 = vadd.f32 0.0, %v416
    %v418 = vpop.f32.mrf.mxu0
    %v419 = vadd.f32 0.0, %v418
    %420 = vmatmul.bf16.gmra.mxu0 %v376
    %v421 = vpop.f32.mrf.mxu0
    %v422 = vadd.f32 0.0, %v421
    %v423 = vpop.f32.mrf.mxu0
    %v424 = vadd.f32 0.0, %v423
    %425 = vmatmul.bf16.gmra.mxu0 %v377
    %v426 = vpop.f32.mrf.mxu0
    %v427 = vadd.f32 0.0, %v426
    %v428 = vpop.f32.mrf.mxu0
    %v429 = vadd.f32 0.0, %v428
    %430 = vmatmul.bf16.gmra.mxu0 %v378
    %v431 = vpop.f32.mrf.mxu0
    %v432 = vadd.f32 0.0, %v431
    %v433 = vpop.f32.mrf.mxu0
    %v434 = vadd.f32 0.0, %v433
    %435 = vdwg.mxu0
    %v436 = vpack.c.bf16 %v399, %v397
    %v437 = vpack.c.bf16 %v404, %v402
    %v438 = vpack.c.bf16 %v409, %v407
    %v439 = vpack.c.bf16 %v414, %v412
    %v440 = vpack.c.bf16 %v419, %v417
    %v441 = vpack.c.bf16 %v424, %v422
    %v442 = vpack.c.bf16 %v429, %v427
    %v443 = vpack.c.bf16 %v434, %v432
    %v460 = vunpack.c.l.b16 %v299
    %v461 = vunpack.c.l.b16 %v300
    %v462 = vunpack.c.l.b16 %v301
    %v463 = vunpack.c.l.b16 %v302
    %v464 = vunpack.c.l.b16 %v303
    %v465 = vunpack.c.l.b16 %v304
    %v466 = vunpack.c.l.b16 %v305
    %v467 = vunpack.c.l.b16 %v306
    %v468 = vunpack.c.l.b16 %v307
    %v469 = vunpack.c.l.b16 %v308
    %v470 = vunpack.c.l.b16 %v309
    %v471 = vunpack.c.l.b16 %v310
    %v472 = vunpack.c.l.b16 %v311
    %v473 = vunpack.c.l.b16 %v312
    %v474 = vunpack.c.l.b16 %v313
    %v475 = vunpack.c.l.b16 %v314
    %v476 = vpack.c.b16 %v461, %v460
    %v477 = vpack.c.b16 %v463, %v462
    %v478 = vpack.c.b16 %v465, %v464
    %v479 = vpack.c.b16 %v467, %v466
    %v480 = vpack.c.b16 %v469, %v468
    %v481 = vpack.c.b16 %v471, %v470
    %v482 = vpack.c.b16 %v473, %v472
    %v483 = vpack.c.b16 %v475, %v474
    %492 = vmatpush.bf16.msra.mxu0 %v483
    %493 = vmatpush.bf16.msra.mxu0 %v482
    %494 = vmatpush.bf16.msra.mxu0 %v481
    %495 = vmatpush.bf16.msra.mxu0 %v480
    %496 = vmatpush.bf16.msra.mxu0 %v479
    %497 = vmatpush.bf16.msra.mxu0 %v478
    %498 = vmatpush.bf16.msra.mxu0 %v477
    %499 = vmatpush.bf16.msra.mxu0 %v476
    %500 = vmatmul.bf16.gmra.mxu0 %v436
    %v501 = vpop.f32.mrf.mxu0
    %v502 = vadd.f32 %v244, %v501
    %v503 = vpop.f32.mrf.mxu0
    %v504 = vadd.f32 %v246, %v503
    %505 = vmatmul.bf16.gmra.mxu0 %v437
    %v506 = vpop.f32.mrf.mxu0
    %v507 = vadd.f32 %v249, %v506
    %v508 = vpop.f32.mrf.mxu0
    %v509 = vadd.f32 %v251, %v508
    %510 = vmatmul.bf16.gmra.mxu0 %v438
    %v511 = vpop.f32.mrf.mxu0
    %v512 = vadd.f32 %v254, %v511
    %v513 = vpop.f32.mrf.mxu0
    %v514 = vadd.f32 %v256, %v513
    %515 = vmatmul.bf16.gmra.mxu0 %v439
    %v516 = vpop.f32.mrf.mxu0
    %v517 = vadd.f32 %v259, %v516
    %v518 = vpop.f32.mrf.mxu0
    %v519 = vadd.f32 %v261, %v518
    %520 = vmatmul.bf16.gmra.mxu0 %v440
    %v521 = vpop.f32.mrf.mxu0
    %v522 = vadd.f32 %v264, %v521
    %v523 = vpop.f32.mrf.mxu0
    %v524 = vadd.f32 %v266, %v523
    %525 = vmatmul.bf16.gmra.mxu0 %v441
    %v526 = vpop.f32.mrf.mxu0
    %v527 = vadd.f32 %v269, %v526
    %v528 = vpop.f32.mrf.mxu0
    %v529 = vadd.f32 %v271, %v528
    %530 = vmatmul.bf16.gmra.mxu0 %v442
    %v531 = vpop.f32.mrf.mxu0
    %v532 = vadd.f32 %v274, %v531
    %v533 = vpop.f32.mrf.mxu0
    %v534 = vadd.f32 %v276, %v533
    %535 = vmatmul.bf16.gmra.mxu0 %v443
    %v536 = vpop.f32.mrf.mxu0
    %v537 = vadd.f32 %v279, %v536
    %v538 = vpop.f32.mrf.mxu0
    %v539 = vadd.f32 %v281, %v538
    %540 = vdwg.mxu0
    %v541 = vmax.f32 %v502, 0.0
    %v542 = vmax.f32 %v504, 0.0
    %v543 = vmax.f32 %v507, 0.0
    %v544 = vmax.f32 %v509, 0.0
    %v545 = vmax.f32 %v512, 0.0
    %v546 = vmax.f32 %v514, 0.0
    %v547 = vmax.f32 %v517, 0.0
    %v548 = vmax.f32 %v519, 0.0
    %v549 = vmax.f32 %v522, 0.0
    %v550 = vmax.f32 %v524, 0.0
    %v551 = vmax.f32 %v527, 0.0
    %v552 = vmax.f32 %v529, 0.0
    %v553 = vmax.f32 %v532, 0.0
    %v554 = vmax.f32 %v534, 0.0
    %v555 = vmax.f32 %v537, 0.0
    %v556 = vmax.f32 %v539, 0.0
    %v557 = vpack.c.bf16 %v542, %v541
    %v558 = vpack.c.bf16 %v544, %v543
    %v559 = vpack.c.bf16 %v546, %v545
    %v560 = vpack.c.bf16 %v548, %v547
    %v561 = vpack.c.bf16 %v550, %v549
    %v562 = vpack.c.bf16 %v552, %v551
    %v563 = vpack.c.bf16 %v554, %v553
    %v564 = vpack.c.bf16 %v556, %v555
    %565 = vmatpush.bf16.msra.mxu0 %v564
    %566 = vmatpush.bf16.msra.mxu0 %v563
    %567 = vmatpush.bf16.msra.mxu0 %v562
    %568 = vmatpush.bf16.msra.mxu0 %v561
    %569 = vmatpush.bf16.msra.mxu0 %v560
    %570 = vmatpush.bf16.msra.mxu0 %v559
    %571 = vmatpush.bf16.msra.mxu0 %v558
    %572 = vmatpush.bf16.msra.mxu0 %v557
    %573 = vmatmul.bf16.gmra.mxu0 %v371
    %v574 = vpop.f32.mrf.mxu0
    %v575 = vadd.f32 0.0, %v574
    %v576 = vpop.f32.mrf.mxu0
    %v577 = vadd.f32 0.0, %v576
    %578 = vmatmul.bf16.gmra.mxu0 %v372
    %v579 = vpop.f32.mrf.mxu0
    %v580 = vadd.f32 0.0, %v579
    %v581 = vpop.f32.mrf.mxu0
    %v582 = vadd.f32 0.0, %v581
    %583 = vmatmul.bf16.gmra.mxu0 %v373
    %v584 = vpop.f32.mrf.mxu0
    %v585 = vadd.f32 0.0, %v584
    %v586 = vpop.f32.mrf.mxu0
    %v587 = vadd.f32 0.0, %v586
    %588 = vmatmul.bf16.gmra.mxu0 %v374
    %v589 = vpop.f32.mrf.mxu0
    %v590 = vadd.f32 0.0, %v589
    %v591 = vpop.f32.mrf.mxu0
    %v592 = vadd.f32 0.0, %v591
    %593 = vmatmul.bf16.gmra.mxu0 %v375
    %v594 = vpop.f32.mrf.mxu0
    %v595 = vadd.f32 0.0, %v594
    %v596 = vpop.f32.mrf.mxu0
    %v597 = vadd.f32 0.0, %v596
    %598 = vmatmul.bf16.gmra.mxu0 %v376
    %v599 = vpop.f32.mrf.mxu0
    %v600 = vadd.f32 0.0, %v599
    %v601 = vpop.f32.mrf.mxu0
    %v602 = vadd.f32 0.0, %v601
    %603 = vmatmul.bf16.gmra.mxu0 %v377
    %v604 = vpop.f32.mrf.mxu0
    %v605 = vadd.f32 0.0, %v604
    %v606 = vpop.f32.mrf.mxu0
    %v607 = vadd.f32 0.0, %v606
    %608 = vmatmul.bf16.gmra.mxu0 %v378
    %v609 = vpop.f32.mrf.mxu0
    %v610 = vadd.f32 0.0, %v609
    %v611 = vpop.f32.mrf.mxu0
    %v612 = vadd.f32 0.0, %v611
    %613 = vdwg.mxu0
    %v614 = vpack.c.bf16 %v577, %v575
    %v615 = vpack.c.bf16 %v582, %v580
    %v616 = vpack.c.bf16 %v587, %v585
    %v617 = vpack.c.bf16 %v592, %v590
    %v618 = vpack.c.bf16 %v597, %v595
    %v619 = vpack.c.bf16 %v602, %v600
    %v620 = vpack.c.bf16 %v607, %v605
    %v621 = vpack.c.bf16 %v612, %v610
    %622 = vmatpush.bf16.msra.mxu0 %v483
    %623 = vmatpush.bf16.msra.mxu0 %v482
    %624 = vmatpush.bf16.msra.mxu0 %v481
    %625 = vmatpush.bf16.msra.mxu0 %v480
    %626 = vmatpush.bf16.msra.mxu0 %v479
    %627 = vmatpush.bf16.msra.mxu0 %v478
    %628 = vmatpush.bf16.msra.mxu0 %v477
    %629 = vmatpush.bf16.msra.mxu0 %v476
    %630 = vmatmul.bf16.gmra.mxu0 %v614
    %v631 = vpop.f32.mrf.mxu0
    %v632 = vadd.f32 %v244, %v631
    %v633 = vpop.f32.mrf.mxu0
    %v634 = vadd.f32 %v246, %v633
    %635 = vmatmul.bf16.gmra.mxu0 %v615
    %v636 = vpop.f32.mrf.mxu0
    %v637 = vadd.f32 %v249, %v636
    %v638 = vpop.f32.mrf.mxu0
    %v639 = vadd.f32 %v251, %v638
    %640 = vmatmul.bf16.gmra.mxu0 %v616
    %v641 = vpop.f32.mrf.mxu0
    %v642 = vadd.f32 %v254, %v641
    %v643 = vpop.f32.mrf.mxu0
    %v644 = vadd.f32 %v256, %v643
    %645 = vmatmul.bf16.gmra.mxu0 %v617
    %v646 = vpop.f32.mrf.mxu0
    %v647 = vadd.f32 %v259, %v646
    %v648 = vpop.f32.mrf.mxu0
    %v649 = vadd.f32 %v261, %v648
    %650 = vmatmul.bf16.gmra.mxu0 %v618
    %v651 = vpop.f32.mrf.mxu0
    %v652 = vadd.f32 %v264, %v651
    %v653 = vpop.f32.mrf.mxu0
    %v654 = vadd.f32 %v266, %v653
    %655 = vmatmul.bf16.gmra.mxu0 %v619
    %v656 = vpop.f32.mrf.mxu0
    %v657 = vadd.f32 %v269, %v656
    %v658 = vpop.f32.mrf.mxu0
    %v659 = vadd.f32 %v271, %v658
    %660 = vmatmul.bf16.gmra.mxu0 %v620
    %v661 = vpop.f32.mrf.mxu0
    %v662 = vadd.f32 %v274, %v661
    %v663 = vpop.f32.mrf.mxu0
    %v664 = vadd.f32 %v276, %v663
    %665 = vmatmul.bf16.gmra.mxu0 %v621
    %v666 = vpop.f32.mrf.mxu0
    %v667 = vadd.f32 %v279, %v666
    %v668 = vpop.f32.mrf.mxu0
    %v669 = vadd.f32 %v281, %v668
    %670 = vdwg.mxu0
    %v671 = vmax.f32 %v632, 0.0
    %v672 = vmax.f32 %v634, 0.0
    %v673 = vmax.f32 %v637, 0.0
    %v674 = vmax.f32 %v639, 0.0
    %v675 = vmax.f32 %v642, 0.0
    %v676 = vmax.f32 %v644, 0.0
    %v677 = vmax.f32 %v647, 0.0
    %v678 = vmax.f32 %v649, 0.0
    %v679 = vmax.f32 %v652, 0.0
    %v680 = vmax.f32 %v654, 0.0
    %v681 = vmax.f32 %v657, 0.0
    %v682 = vmax.f32 %v659, 0.0
    %v683 = vmax.f32 %v662, 0.0
    %v684 = vmax.f32 %v664, 0.0
    %v685 = vmax.f32 %v667, 0.0
    %v686 = vmax.f32 %v669, 0.0
    %v687 = vpack.c.bf16 %v672, %v671
    %v688 = vpack.c.bf16 %v674, %v673
    %v689 = vpack.c.bf16 %v676, %v675
    %v690 = vpack.c.bf16 %v678, %v677
    %v691 = vpack.c.bf16 %v680, %v679
    %v692 = vpack.c.bf16 %v682, %v681
    %v693 = vpack.c.bf16 %v684, %v683
    %v694 = vpack.c.bf16 %v686, %v685
    %695 = vmatpush.bf16.msra.mxu0 %v694
    %696 = vmatpush.bf16.msra.mxu0 %v693
    %697 = vmatpush.bf16.msra.mxu0 %v692
    %698 = vmatpush.bf16.msra.mxu0 %v691
    %699 = vmatpush.bf16.msra.mxu0 %v690
    %700 = vmatpush.bf16.msra.mxu0 %v689
    %701 = vmatpush.bf16.msra.mxu0 %v688
    %702 = vmatpush.bf16.msra.mxu0 %v687
    %703 = vmatmul.bf16.gmra.mxu0 %v371
    %v704 = vpop.f32.mrf.mxu0
    %v705 = vadd.f32 0.0, %v704
    %v706 = vpop.f32.mrf.mxu0
    %v707 = vadd.f32 0.0, %v706
    %708 = vmatmul.bf16.gmra.mxu0 %v372
    %v709 = vpop.f32.mrf.mxu0
    %v710 = vadd.f32 0.0, %v709
    %v711 = vpop.f32.mrf.mxu0
    %v712 = vadd.f32 0.0, %v711
    %713 = vmatmul.bf16.gmra.mxu0 %v373
    %v714 = vpop.f32.mrf.mxu0
    %v715 = vadd.f32 0.0, %v714
    %v716 = vpop.f32.mrf.mxu0
    %v717 = vadd.f32 0.0, %v716
    %718 = vmatmul.bf16.gmra.mxu0 %v374
    %v719 = vpop.f32.mrf.mxu0
    %v720 = vadd.f32 0.0, %v719
    %v721 = vpop.f32.mrf.mxu0
    %v722 = vadd.f32 0.0, %v721
    %723 = vmatmul.bf16.gmra.mxu0 %v375
    %v724 = vpop.f32.mrf.mxu0
    %v725 = vadd.f32 0.0, %v724
    %v726 = vpop.f32.mrf.mxu0
    %v727 = vadd.f32 0.0, %v726
    %728 = vmatmul.bf16.gmra.mxu0 %v376
    %v729 = vpop.f32.mrf.mxu0
    %v730 = vadd.f32 0.0, %v729
    %v731 = vpop.f32.mrf.mxu0
    %v732 = vadd.f32 0.0, %v731
    %733 = vmatmul.bf16.gmra.mxu0 %v377
    %v734 = vpop.f32.mrf.mxu0
    %v735 = vadd.f32 0.0, %v734
    %v736 = vpop.f32.mrf.mxu0
    %v737 = vadd.f32 0.0, %v736
    %738 = vmatmul.bf16.gmra.mxu0 %v378
    %v739 = vpop.f32.mrf.mxu0
    %v740 = vadd.f32 0.0, %v739
    %v741 = vpop.f32.mrf.mxu0
    %v742 = vadd.f32 0.0, %v741
    %743 = vdwg.mxu0
    %v744 = vpack.c.bf16 %v707, %v705
    %v745 = vpack.c.bf16 %v712, %v710
    %v746 = vpack.c.bf16 %v717, %v715
    %v747 = vpack.c.bf16 %v722, %v720
    %v748 = vpack.c.bf16 %v727, %v725
    %v749 = vpack.c.bf16 %v732, %v730
    %v750 = vpack.c.bf16 %v737, %v735
    %v751 = vpack.c.bf16 %v742, %v740
    %752 = vmatpush.bf16.msra.mxu0 %v483
    %753 = vmatpush.bf16.msra.mxu0 %v482
    %754 = vmatpush.bf16.msra.mxu0 %v481
    %755 = vmatpush.bf16.msra.mxu0 %v480
    %756 = vmatpush.bf16.msra.mxu0 %v479
    %757 = vmatpush.bf16.msra.mxu0 %v478
    %758 = vmatpush.bf16.msra.mxu0 %v477
    %759 = vmatpush.bf16.msra.mxu0 %v476
    %760 = vmatmul.bf16.gmra.mxu0 %v744
    %v761 = vpop.f32.mrf.mxu0
    %v762 = vadd.f32 %v244, %v761
    %v763 = vpop.f32.mrf.mxu0
    %v764 = vadd.f32 %v246, %v763
    %765 = vmatmul.bf16.gmra.mxu0 %v745
    %v766 = vpop.f32.mrf.mxu0
    %v767 = vadd.f32 %v249, %v766
    %v768 = vpop.f32.mrf.mxu0
    %v769 = vadd.f32 %v251, %v768
    %770 = vmatmul.bf16.gmra.mxu0 %v746
    %v771 = vpop.f32.mrf.mxu0
    %v772 = vadd.f32 %v254, %v771
    %v773 = vpop.f32.mrf.mxu0
    %v774 = vadd.f32 %v256, %v773
    %775 = vmatmul.bf16.gmra.mxu0 %v747
    %v776 = vpop.f32.mrf.mxu0
    %v777 = vadd.f32 %v259, %v776
    %v778 = vpop.f32.mrf.mxu0
    %v779 = vadd.f32 %v261, %v778
    %780 = vmatmul.bf16.gmra.mxu0 %v748
    %v781 = vpop.f32.mrf.mxu0
    %v782 = vadd.f32 %v264, %v781
    %v783 = vpop.f32.mrf.mxu0
    %v784 = vadd.f32 %v266, %v783
    %785 = vmatmul.bf16.gmra.mxu0 %v749
    %v786 = vpop.f32.mrf.mxu0
    %v787 = vadd.f32 %v269, %v786
    %v788 = vpop.f32.mrf.mxu0
    %v789 = vadd.f32 %v271, %v788
    %790 = vmatmul.bf16.gmra.mxu0 %v750
    %v791 = vpop.f32.mrf.mxu0
    %v792 = vadd.f32 %v274, %v791
    %v793 = vpop.f32.mrf.mxu0
    %v794 = vadd.f32 %v276, %v793
    %795 = vmatmul.bf16.gmra.mxu0 %v751
    %v796 = vpop.f32.mrf.mxu0
    %v797 = vadd.f32 %v279, %v796
    %v798 = vpop.f32.mrf.mxu0
    %v799 = vadd.f32 %v281, %v798
    %800 = vdwg.mxu0
    %v801 = vmax.f32 %v762, 0.0
    %v802 = vmax.f32 %v764, 0.0
    %v803 = vmax.f32 %v767, 0.0
    %v804 = vmax.f32 %v769, 0.0
    %v805 = vmax.f32 %v772, 0.0
    %v806 = vmax.f32 %v774, 0.0
    %v807 = vmax.f32 %v777, 0.0
    %v808 = vmax.f32 %v779, 0.0
    %v809 = vmax.f32 %v782, 0.0
    %v810 = vmax.f32 %v784, 0.0
    %v811 = vmax.f32 %v787, 0.0
    %v812 = vmax.f32 %v789, 0.0
    %v813 = vmax.f32 %v792, 0.0
    %v814 = vmax.f32 %v794, 0.0
    %v815 = vmax.f32 %v797, 0.0
    %v816 = vmax.f32 %v799, 0.0
    %v817 = vpack.c.bf16 %v802, %v801
    %v818 = vpack.c.bf16 %v804, %v803
    %v819 = vpack.c.bf16 %v806, %v805
    %v820 = vpack.c.bf16 %v808, %v807
    %v821 = vpack.c.bf16 %v810, %v809
    %v822 = vpack.c.bf16 %v812, %v811
    %v823 = vpack.c.bf16 %v814, %v813
    %v824 = vpack.c.bf16 %v816, %v815
    %825 = vmatpush.bf16.msra.mxu0 %v824
    %826 = vmatpush.bf16.msra.mxu0 %v823
    %827 = vmatpush.bf16.msra.mxu0 %v822
    %828 = vmatpush.bf16.msra.mxu0 %v821
    %829 = vmatpush.bf16.msra.mxu0 %v820
    %830 = vmatpush.bf16.msra.mxu0 %v819
    %831 = vmatpush.bf16.msra.mxu0 %v818
    %832 = vmatpush.bf16.msra.mxu0 %v817
    %833 = vmatmul.bf16.gmra.mxu0 %v371
    %v834 = vpop.f32.mrf.mxu0
    %v835 = vadd.f32 0.0, %v834
    %v836 = vpop.f32.mrf.mxu0
    %v837 = vadd.f32 0.0, %v836
    %838 = vmatmul.bf16.gmra.mxu0 %v372
    %v839 = vpop.f32.mrf.mxu0
    %v840 = vadd.f32 0.0, %v839
    %v841 = vpop.f32.mrf.mxu0
    %v842 = vadd.f32 0.0, %v841
    %843 = vmatmul.bf16.gmra.mxu0 %v373
    %v844 = vpop.f32.mrf.mxu0
    %v845 = vadd.f32 0.0, %v844
    %v846 = vpop.f32.mrf.mxu0
    %v847 = vadd.f32 0.0, %v846
    %848 = vmatmul.bf16.gmra.mxu0 %v374
    %v849 = vpop.f32.mrf.mxu0
    %v850 = vadd.f32 0.0, %v849
    %v851 = vpop.f32.mrf.mxu0
    %v852 = vadd.f32 0.0, %v851
    %853 = vmatmul.bf16.gmra.mxu0 %v375
    %v854 = vpop.f32.mrf.mxu0
    %v855 = vadd.f32 0.0, %v854
    %v856 = vpop.f32.mrf.mxu0
    %v857 = vadd.f32 0.0, %v856
    %858 = vmatmul.bf16.gmra.mxu0 %v376
    %v859 = vpop.f32.mrf.mxu0
    %v860 = vadd.f32 0.0, %v859
    %v861 = vpop.f32.mrf.mxu0
    %v862 = vadd.f32 0.0, %v861
    %863 = vmatmul.bf16.gmra.mxu0 %v377
    %v864 = vpop.f32.mrf.mxu0
    %v865 = vadd.f32 0.0, %v864
    %v866 = vpop.f32.mrf.mxu0
    %v867 = vadd.f32 0.0, %v866
    %868 = vmatmul.bf16.gmra.mxu0 %v378
    %v869 = vpop.f32.mrf.mxu0
    %v870 = vadd.f32 0.0, %v869
    %v871 = vpop.f32.mrf.mxu0
    %v872 = vadd.f32 0.0, %v871
    %873 = vdwg.mxu0
    %v874 = vpack.c.bf16 %v837, %v835
    %v875 = vpack.c.bf16 %v842, %v840
    %v876 = vpack.c.bf16 %v847, %v845
    %v877 = vpack.c.bf16 %v852, %v850
    %v878 = vpack.c.bf16 %v857, %v855
    %v879 = vpack.c.bf16 %v862, %v860
    %v880 = vpack.c.bf16 %v867, %v865
    %v881 = vpack.c.bf16 %v872, %v870
    %882 = vmatpush.bf16.msra.mxu0 %v483
    %883 = vmatpush.bf16.msra.mxu0 %v482
    %884 = vmatpush.bf16.msra.mxu0 %v481
    %885 = vmatpush.bf16.msra.mxu0 %v480
    %886 = vmatpush.bf16.msra.mxu0 %v479
    %887 = vmatpush.bf16.msra.mxu0 %v478
    %888 = vmatpush.bf16.msra.mxu0 %v477
    %889 = vmatpush.bf16.msra.mxu0 %v476
    %890 = vmatmul.bf16.gmra.mxu0 %v874
    %v891 = vpop.f32.mrf.mxu0
    %v892 = vadd.f32 %v244, %v891
    %v893 = vpop.f32.mrf.mxu0
    %v894 = vadd.f32 %v246, %v893
    %895 = vmatmul.bf16.gmra.mxu0 %v875
    %v896 = vpop.f32.mrf.mxu0
    %v897 = vadd.f32 %v249, %v896
    %v898 = vpop.f32.mrf.mxu0
    %v899 = vadd.f32 %v251, %v898
    %900 = vmatmul.bf16.gmra.mxu0 %v876
    %v901 = vpop.f32.mrf.mxu0
    %v902 = vadd.f32 %v254, %v901
    %v903 = vpop.f32.mrf.mxu0
    %v904 = vadd.f32 %v256, %v903
    %905 = vmatmul.bf16.gmra.mxu0 %v877
    %v906 = vpop.f32.mrf.mxu0
    %v907 = vadd.f32 %v259, %v906
    %v908 = vpop.f32.mrf.mxu0
    %v909 = vadd.f32 %v261, %v908
    %910 = vmatmul.bf16.gmra.mxu0 %v878
    %v911 = vpop.f32.mrf.mxu0
    %v912 = vadd.f32 %v264, %v911
    %v913 = vpop.f32.mrf.mxu0
    %v914 = vadd.f32 %v266, %v913
    %915 = vmatmul.bf16.gmra.mxu0 %v879
    %v916 = vpop.f32.mrf.mxu0
    %v917 = vadd.f32 %v269, %v916
    %v918 = vpop.f32.mrf.mxu0
    %v919 = vadd.f32 %v271, %v918
    %920 = vmatmul.bf16.gmra.mxu0 %v880
    %v921 = vpop.f32.mrf.mxu0
    %v922 = vadd.f32 %v274, %v921
    %v923 = vpop.f32.mrf.mxu0
    %v924 = vadd.f32 %v276, %v923
    %925 = vmatmul.bf16.gmra.mxu0 %v881
    %v926 = vpop.f32.mrf.mxu0
    %v927 = vadd.f32 %v279, %v926
    %v928 = vpop.f32.mrf.mxu0
    %v929 = vadd.f32 %v281, %v928
    %930 = vdwg.mxu0
    %v931 = vmax.f32 %v892, 0.0
    %v932 = vmax.f32 %v894, 0.0
    %v933 = vmax.f32 %v897, 0.0
    %v934 = vmax.f32 %v899, 0.0
    %v935 = vmax.f32 %v902, 0.0
    %v936 = vmax.f32 %v904, 0.0
    %v937 = vmax.f32 %v907, 0.0
    %v938 = vmax.f32 %v909, 0.0
    %v939 = vmax.f32 %v912, 0.0
    %v940 = vmax.f32 %v914, 0.0
    %v941 = vmax.f32 %v917, 0.0
    %v942 = vmax.f32 %v919, 0.0
    %v943 = vmax.f32 %v922, 0.0
    %v944 = vmax.f32 %v924, 0.0
    %v945 = vmax.f32 %v927, 0.0
    %v946 = vmax.f32 %v929, 0.0
    %v947 = vpack.c.bf16 %v932, %v931
    %v948 = vpack.c.bf16 %v934, %v933
    %v949 = vpack.c.bf16 %v936, %v935
    %v950 = vpack.c.bf16 %v938, %v937
    %v951 = vpack.c.bf16 %v940, %v939
    %v952 = vpack.c.bf16 %v942, %v941
    %v953 = vpack.c.bf16 %v944, %v943
    %v954 = vpack.c.bf16 %v946, %v945
    %955 = vmatpush.bf16.msra.mxu0 %v954
    %956 = vmatpush.bf16.msra.mxu0 %v953
    %957 = vmatpush.bf16.msra.mxu0 %v952
    %958 = vmatpush.bf16.msra.mxu0 %v951
    %959 = vmatpush.bf16.msra.mxu0 %v950
    %960 = vmatpush.bf16.msra.mxu0 %v949
    %961 = vmatpush.bf16.msra.mxu0 %v948
    %962 = vmatpush.bf16.msra.mxu0 %v947
    %963 = vmatmul.bf16.gmra.mxu0 %v371
    %v964 = vpop.f32.mrf.mxu0
    %v965 = vadd.f32 0.0, %v964
    %v966 = vpop.f32.mrf.mxu0
    %v967 = vadd.f32 0.0, %v966
    %968 = vmatmul.bf16.gmra.mxu0 %v372
    %v969 = vpop.f32.mrf.mxu0
    %v970 = vadd.f32 0.0, %v969
    %v971 = vpop.f32.mrf.mxu0
    %v972 = vadd.f32 0.0, %v971
    %973 = vmatmul.bf16.gmra.mxu0 %v373
    %v974 = vpop.f32.mrf.mxu0
    %v975 = vadd.f32 0.0, %v974
    %v976 = vpop.f32.mrf.mxu0
    %v977 = vadd.f32 0.0, %v976
    %978 = vmatmul.bf16.gmra.mxu0 %v374
    %v979 = vpop.f32.mrf.mxu0
    %v980 = vadd.f32 0.0, %v979
    %v981 = vpop.f32.mrf.mxu0
    %v982 = vadd.f32 0.0, %v981
    %983 = vmatmul.bf16.gmra.mxu0 %v375
    %v984 = vpop.f32.mrf.mxu0
    %v985 = vadd.f32 0.0, %v984
    %v986 = vpop.f32.mrf.mxu0
    %v987 = vadd.f32 0.0, %v986
    %988 = vmatmul.bf16.gmra.mxu0 %v376
    %v989 = vpop.f32.mrf.mxu0
    %v990 = vadd.f32 0.0, %v989
    %v991 = vpop.f32.mrf.mxu0
    %v992 = vadd.f32 0.0, %v991
    %993 = vmatmul.bf16.gmra.mxu0 %v377
    %v994 = vpop.f32.mrf.mxu0
    %v995 = vadd.f32 0.0, %v994
    %v996 = vpop.f32.mrf.mxu0
    %v997 = vadd.f32 0.0, %v996
    %998 = vmatmul.bf16.gmra.mxu0 %v378
    %v999 = vpop.f32.mrf.mxu0
    %v1000 = vadd.f32 0.0, %v999
    %v1001 = vpop.f32.mrf.mxu0
    %v1002 = vadd.f32 0.0, %v1001
    %1003 = vdwg.mxu0
    %v1004 = vpack.c.bf16 %v967, %v965
    %v1005 = vpack.c.bf16 %v972, %v970
    %v1006 = vpack.c.bf16 %v977, %v975
    %v1007 = vpack.c.bf16 %v982, %v980
    %v1008 = vpack.c.bf16 %v987, %v985
    %v1009 = vpack.c.bf16 %v992, %v990
    %v1010 = vpack.c.bf16 %v997, %v995
    %v1011 = vpack.c.bf16 %v1002, %v1000
    %1012 = vmatpush.bf16.msra.mxu0 %v483
    %1013 = vmatpush.bf16.msra.mxu0 %v482
    %1014 = vmatpush.bf16.msra.mxu0 %v481
    %1015 = vmatpush.bf16.msra.mxu0 %v480
    %1016 = vmatpush.bf16.msra.mxu0 %v479
    %1017 = vmatpush.bf16.msra.mxu0 %v478
    %1018 = vmatpush.bf16.msra.mxu0 %v477
    %1019 = vmatpush.bf16.msra.mxu0 %v476
    %1020 = vmatmul.bf16.gmra.mxu0 %v1004
    %v1021 = vpop.f32.mrf.mxu0
    %v1022 = vadd.f32 %v244, %v1021
    %v1023 = vpop.f32.mrf.mxu0
    %v1024 = vadd.f32 %v246, %v1023
    %1025 = vmatmul.bf16.gmra.mxu0 %v1005
    %v1026 = vpop.f32.mrf.mxu0
    %v1027 = vadd.f32 %v249, %v1026
    %v1028 = vpop.f32.mrf.mxu0
    %v1029 = vadd.f32 %v251, %v1028
    %1030 = vmatmul.bf16.gmra.mxu0 %v1006
    %v1031 = vpop.f32.mrf.mxu0
    %v1032 = vadd.f32 %v254, %v1031
    %v1033 = vpop.f32.mrf.mxu0
    %v1034 = vadd.f32 %v256, %v1033
    %1035 = vmatmul.bf16.gmra.mxu0 %v1007
    %v1036 = vpop.f32.mrf.mxu0
    %v1037 = vadd.f32 %v259, %v1036
    %v1038 = vpop.f32.mrf.mxu0
    %v1039 = vadd.f32 %v261, %v1038
    %1040 = vmatmul.bf16.gmra.mxu0 %v1008
    %v1041 = vpop.f32.mrf.mxu0
    %v1042 = vadd.f32 %v264, %v1041
    %v1043 = vpop.f32.mrf.mxu0
    %v1044 = vadd.f32 %v266, %v1043
    %1045 = vmatmul.bf16.gmra.mxu0 %v1009
    %v1046 = vpop.f32.mrf.mxu0
    %v1047 = vadd.f32 %v269, %v1046
    %v1048 = vpop.f32.mrf.mxu0
    %v1049 = vadd.f32 %v271, %v1048
    %1050 = vmatmul.bf16.gmra.mxu0 %v1010
    %v1051 = vpop.f32.mrf.mxu0
    %v1052 = vadd.f32 %v274, %v1051
    %v1053 = vpop.f32.mrf.mxu0
    %v1054 = vadd.f32 %v276, %v1053
    %1055 = vmatmul.bf16.gmra.mxu0 %v1011
    %v1056 = vpop.f32.mrf.mxu0
    %v1057 = vadd.f32 %v279, %v1056
    %v1058 = vpop.f32.mrf.mxu0
    %v1059 = vadd.f32 %v281, %v1058
    %1060 = vdwg.mxu0
    %v1061 = vmax.f32 %v1022, 0.0
    %v1062 = vmax.f32 %v1024, 0.0
    %v1063 = vmax.f32 %v1027, 0.0
    %v1064 = vmax.f32 %v1029, 0.0
    %v1065 = vmax.f32 %v1032, 0.0
    %v1066 = vmax.f32 %v1034, 0.0
    %v1067 = vmax.f32 %v1037, 0.0
    %v1068 = vmax.f32 %v1039, 0.0
    %v1069 = vmax.f32 %v1042, 0.0
    %v1070 = vmax.f32 %v1044, 0.0
    %v1071 = vmax.f32 %v1047, 0.0
    %v1072 = vmax.f32 %v1049, 0.0
    %v1073 = vmax.f32 %v1052, 0.0
    %v1074 = vmax.f32 %v1054, 0.0
    %v1075 = vmax.f32 %v1057, 0.0
    %v1076 = vmax.f32 %v1059, 0.0
    %v1077 = vpack.c.bf16 %v1062, %v1061
    %v1078 = vpack.c.bf16 %v1064, %v1063
    %v1079 = vpack.c.bf16 %v1066, %v1065
    %v1080 = vpack.c.bf16 %v1068, %v1067
    %v1081 = vpack.c.bf16 %v1070, %v1069
    %v1082 = vpack.c.bf16 %v1072, %v1071
    %v1083 = vpack.c.bf16 %v1074, %v1073
    %v1084 = vpack.c.bf16 %v1076, %v1075
    %1085 = vmatpush.bf16.msra.mxu0 %v1084
    %1086 = vmatpush.bf16.msra.mxu0 %v1083
    %1087 = vmatpush.bf16.msra.mxu0 %v1082
    %1088 = vmatpush.bf16.msra.mxu0 %v1081
    %1089 = vmatpush.bf16.msra.mxu0 %v1080
    %1090 = vmatpush.bf16.msra.mxu0 %v1079
    %1091 = vmatpush.bf16.msra.mxu0 %v1078
    %1092 = vmatpush.bf16.msra.mxu0 %v1077
    %1093 = vmatmul.bf16.gmra.mxu0 %v371
    %v1094 = vpop.f32.mrf.mxu0
    %v1095 = vadd.f32 0.0, %v1094
    %v1096 = vpop.f32.mrf.mxu0
    %v1097 = vadd.f32 0.0, %v1096
    %1098 = vmatmul.bf16.gmra.mxu0 %v372
    %v1099 = vpop.f32.mrf.mxu0
    %v1100 = vadd.f32 0.0, %v1099
    %v1101 = vpop.f32.mrf.mxu0
    %v1102 = vadd.f32 0.0, %v1101
    %1103 = vmatmul.bf16.gmra.mxu0 %v373
    %v1104 = vpop.f32.mrf.mxu0
    %v1105 = vadd.f32 0.0, %v1104
    %v1106 = vpop.f32.mrf.mxu0
    %v1107 = vadd.f32 0.0, %v1106
    %1108 = vmatmul.bf16.gmra.mxu0 %v374
    %v1109 = vpop.f32.mrf.mxu0
    %v1110 = vadd.f32 0.0, %v1109
    %v1111 = vpop.f32.mrf.mxu0
    %v1112 = vadd.f32 0.0, %v1111
    %1113 = vmatmul.bf16.gmra.mxu0 %v375
    %v1114 = vpop.f32.mrf.mxu0
    %v1115 = vadd.f32 0.0, %v1114
    %v1116 = vpop.f32.mrf.mxu0
    %v1117 = vadd.f32 0.0, %v1116
    %1118 = vmatmul.bf16.gmra.mxu0 %v376
    %v1119 = vpop.f32.mrf.mxu0
    %v1120 = vadd.f32 0.0, %v1119
    %v1121 = vpop.f32.mrf.mxu0
    %v1122 = vadd.f32 0.0, %v1121
    %1123 = vmatmul.bf16.gmra.mxu0 %v377
    %v1124 = vpop.f32.mrf.mxu0
    %v1125 = vadd.f32 0.0, %v1124
    %v1126 = vpop.f32.mrf.mxu0
    %v1127 = vadd.f32 0.0, %v1126
    %1128 = vmatmul.bf16.gmra.mxu0 %v378
    %v1129 = vpop.f32.mrf.mxu0
    %v1130 = vadd.f32 0.0, %v1129
    %v1131 = vpop.f32.mrf.mxu0
    %v1132 = vadd.f32 0.0, %v1131
    %1133 = vdwg.mxu0
    %v1134 = vpack.c.bf16 %v1097, %v1095
    %v1135 = vpack.c.bf16 %v1102, %v1100
    %v1136 = vpack.c.bf16 %v1107, %v1105
    %v1137 = vpack.c.bf16 %v1112, %v1110
    %v1138 = vpack.c.bf16 %v1117, %v1115
    %v1139 = vpack.c.bf16 %v1122, %v1120
    %v1140 = vpack.c.bf16 %v1127, %v1125
    %v1141 = vpack.c.bf16 %v1132, %v1130
    %1142 = vmatpush.bf16.msra.mxu0 %v483
    %1143 = vmatpush.bf16.msra.mxu0 %v482
    %1144 = vmatpush.bf16.msra.mxu0 %v481
    %1145 = vmatpush.bf16.msra.mxu0 %v480
    %1146 = vmatpush.bf16.msra.mxu0 %v479
    %1147 = vmatpush.bf16.msra.mxu0 %v478
    %1148 = vmatpush.bf16.msra.mxu0 %v477
    %1149 = vmatpush.bf16.msra.mxu0 %v476
    %1150 = vmatmul.bf16.gmra.mxu0 %v1134
    %v1151 = vpop.f32.mrf.mxu0
    %v1152 = vadd.f32 %v244, %v1151
    %v1153 = vpop.f32.mrf.mxu0
    %v1154 = vadd.f32 %v246, %v1153
    %1155 = vmatmul.bf16.gmra.mxu0 %v1135
    %v1156 = vpop.f32.mrf.mxu0
    %v1157 = vadd.f32 %v249, %v1156
    %v1158 = vpop.f32.mrf.mxu0
    %v1159 = vadd.f32 %v251, %v1158
    %1160 = vmatmul.bf16.gmra.mxu0 %v1136
    %v1161 = vpop.f32.mrf.mxu0
    %v1162 = vadd.f32 %v254, %v1161
    %v1163 = vpop.f32.mrf.mxu0
    %v1164 = vadd.f32 %v256, %v1163
    %1165 = vmatmul.bf16.gmra.mxu0 %v1137
    %v1166 = vpop.f32.mrf.mxu0
    %v1167 = vadd.f32 %v259, %v1166
    %v1168 = vpop.f32.mrf.mxu0
    %v1169 = vadd.f32 %v261, %v1168
    %1170 = vmatmul.bf16.gmra.mxu0 %v1138
    %v1171 = vpop.f32.mrf.mxu0
    %v1172 = vadd.f32 %v264, %v1171
    %v1173 = vpop.f32.mrf.mxu0
    %v1174 = vadd.f32 %v266, %v1173
    %1175 = vmatmul.bf16.gmra.mxu0 %v1139
    %v1176 = vpop.f32.mrf.mxu0
    %v1177 = vadd.f32 %v269, %v1176
    %v1178 = vpop.f32.mrf.mxu0
    %v1179 = vadd.f32 %v271, %v1178
    %1180 = vmatmul.bf16.gmra.mxu0 %v1140
    %v1181 = vpop.f32.mrf.mxu0
    %v1182 = vadd.f32 %v274, %v1181
    %v1183 = vpop.f32.mrf.mxu0
    %v1184 = vadd.f32 %v276, %v1183
    %1185 = vmatmul.bf16.gmra.mxu0 %v1141
    %v1186 = vpop.f32.mrf.mxu0
    %v1187 = vadd.f32 %v279, %v1186
    %v1188 = vpop.f32.mrf.mxu0
    %v1189 = vadd.f32 %v281, %v1188
    %1190 = vdwg.mxu0
    %v1191 = vmax.f32 %v1152, 0.0
    %v1192 = vmax.f32 %v1154, 0.0
    %v1193 = vmax.f32 %v1157, 0.0
    %v1194 = vmax.f32 %v1159, 0.0
    %v1195 = vmax.f32 %v1162, 0.0
    %v1196 = vmax.f32 %v1164, 0.0
    %v1197 = vmax.f32 %v1167, 0.0
    %v1198 = vmax.f32 %v1169, 0.0
    %v1199 = vmax.f32 %v1172, 0.0
    %v1200 = vmax.f32 %v1174, 0.0
    %v1201 = vmax.f32 %v1177, 0.0
    %v1202 = vmax.f32 %v1179, 0.0
    %v1203 = vmax.f32 %v1182, 0.0
    %v1204 = vmax.f32 %v1184, 0.0
    %v1205 = vmax.f32 %v1187, 0.0
    %v1206 = vmax.f32 %v1189, 0.0
    %v1207 = vpack.c.bf16 %v1192, %v1191
    %v1208 = vpack.c.bf16 %v1194, %v1193
    %v1209 = vpack.c.bf16 %v1196, %v1195
    %v1210 = vpack.c.bf16 %v1198, %v1197
    %v1211 = vpack.c.bf16 %v1200, %v1199
    %v1212 = vpack.c.bf16 %v1202, %v1201
    %v1213 = vpack.c.bf16 %v1204, %v1203
    %v1214 = vpack.c.bf16 %v1206, %v1205
    %1215 = vmatpush.bf16.msra.mxu0 %v1214
    %1216 = vmatpush.bf16.msra.mxu0 %v1213
    %1217 = vmatpush.bf16.msra.mxu0 %v1212
    %1218 = vmatpush.bf16.msra.mxu0 %v1211
    %1219 = vmatpush.bf16.msra.mxu0 %v1210
    %1220 = vmatpush.bf16.msra.mxu0 %v1209
    %1221 = vmatpush.bf16.msra.mxu0 %v1208
    %1222 = vmatpush.bf16.msra.mxu0 %v1207
    %1223 = vmatmul.bf16.gmra.mxu0 %v371
    %v1224 = vpop.f32.mrf.mxu0
    %v1225 = vadd.f32 0.0, %v1224
    %v1226 = vpop.f32.mrf.mxu0
    %v1227 = vadd.f32 0.0, %v1226
    %1228 = vmatmul.bf16.gmra.mxu0 %v372
    %v1229 = vpop.f32.mrf.mxu0
    %v1230 = vadd.f32 0.0, %v1229
    %v1231 = vpop.f32.mrf.mxu0
    %v1232 = vadd.f32 0.0, %v1231
    %1233 = vmatmul.bf16.gmra.mxu0 %v373
    %v1234 = vpop.f32.mrf.mxu0
    %v1235 = vadd.f32 0.0, %v1234
    %v1236 = vpop.f32.mrf.mxu0
    %v1237 = vadd.f32 0.0, %v1236
    %1238 = vmatmul.bf16.gmra.mxu0 %v374
    %v1239 = vpop.f32.mrf.mxu0
    %v1240 = vadd.f32 0.0, %v1239
    %v1241 = vpop.f32.mrf.mxu0
    %v1242 = vadd.f32 0.0, %v1241
    %1243 = vmatmul.bf16.gmra.mxu0 %v375
    %v1244 = vpop.f32.mrf.mxu0
    %v1245 = vadd.f32 0.0, %v1244
    %v1246 = vpop.f32.mrf.mxu0
    %v1247 = vadd.f32 0.0, %v1246
    %1248 = vmatmul.bf16.gmra.mxu0 %v376
    %v1249 = vpop.f32.mrf.mxu0
    %v1250 = vadd.f32 0.0, %v1249
    %v1251 = vpop.f32.mrf.mxu0
    %v1252 = vadd.f32 0.0, %v1251
    %1253 = vmatmul.bf16.gmra.mxu0 %v377
    %v1254 = vpop.f32.mrf.mxu0
    %v1255 = vadd.f32 0.0, %v1254
    %v1256 = vpop.f32.mrf.mxu0
    %v1257 = vadd.f32 0.0, %v1256
    %1258 = vmatmul.bf16.gmra.mxu0 %v378
    %v1259 = vpop.f32.mrf.mxu0
    %v1260 = vadd.f32 0.0, %v1259
    %v1261 = vpop.f32.mrf.mxu0
    %v1262 = vadd.f32 0.0, %v1261
    %1263 = vdwg.mxu0
    %v1264 = vpack.c.bf16 %v1227, %v1225
    %v1265 = vpack.c.bf16 %v1232, %v1230
    %v1266 = vpack.c.bf16 %v1237, %v1235
    %v1267 = vpack.c.bf16 %v1242, %v1240
    %v1268 = vpack.c.bf16 %v1247, %v1245
    %v1269 = vpack.c.bf16 %v1252, %v1250
    %v1270 = vpack.c.bf16 %v1257, %v1255
    %v1271 = vpack.c.bf16 %v1262, %v1260
    %1272 = vmatpush.bf16.msra.mxu0 %v483
    %1273 = vmatpush.bf16.msra.mxu0 %v482
    %1274 = vmatpush.bf16.msra.mxu0 %v481
    %1275 = vmatpush.bf16.msra.mxu0 %v480
    %1276 = vmatpush.bf16.msra.mxu0 %v479
    %1277 = vmatpush.bf16.msra.mxu0 %v478
    %1278 = vmatpush.bf16.msra.mxu0 %v477
    %1279 = vmatpush.bf16.msra.mxu0 %v476
    %1280 = vmatmul.bf16.gmra.mxu0 %v1264
    %v1281 = vpop.f32.mrf.mxu0
    %v1282 = vadd.f32 %v244, %v1281
    %v1283 = vpop.f32.mrf.mxu0
    %v1284 = vadd.f32 %v246, %v1283
    %1285 = vmatmul.bf16.gmra.mxu0 %v1265
    %v1286 = vpop.f32.mrf.mxu0
    %v1287 = vadd.f32 %v249, %v1286
    %v1288 = vpop.f32.mrf.mxu0
    %v1289 = vadd.f32 %v251, %v1288
    %1290 = vmatmul.bf16.gmra.mxu0 %v1266
    %v1291 = vpop.f32.mrf.mxu0
    %v1292 = vadd.f32 %v254, %v1291
    %v1293 = vpop.f32.mrf.mxu0
    %v1294 = vadd.f32 %v256, %v1293
    %1295 = vmatmul.bf16.gmra.mxu0 %v1267
    %v1296 = vpop.f32.mrf.mxu0
    %v1297 = vadd.f32 %v259, %v1296
    %v1298 = vpop.f32.mrf.mxu0
    %v1299 = vadd.f32 %v261, %v1298
    %1300 = vmatmul.bf16.gmra.mxu0 %v1268
    %v1301 = vpop.f32.mrf.mxu0
    %v1302 = vadd.f32 %v264, %v1301
    %v1303 = vpop.f32.mrf.mxu0
    %v1304 = vadd.f32 %v266, %v1303
    %1305 = vmatmul.bf16.gmra.mxu0 %v1269
    %v1306 = vpop.f32.mrf.mxu0
    %v1307 = vadd.f32 %v269, %v1306
    %v1308 = vpop.f32.mrf.mxu0
    %v1309 = vadd.f32 %v271, %v1308
    %1310 = vmatmul.bf16.gmra.mxu0 %v1270
    %v1311 = vpop.f32.mrf.mxu0
    %v1312 = vadd.f32 %v274, %v1311
    %v1313 = vpop.f32.mrf.mxu0
    %v1314 = vadd.f32 %v276, %v1313
    %1315 = vmatmul.bf16.gmra.mxu0 %v1271
    %v1316 = vpop.f32.mrf.mxu0
    %v1317 = vadd.f32 %v279, %v1316
    %v1318 = vpop.f32.mrf.mxu0
    %v1319 = vadd.f32 %v281, %v1318
    %1320 = vdwg.mxu0
    %v1321 = vmax.f32 %v1282, 0.0
    %v1322 = vmax.f32 %v1284, 0.0
    %v1323 = vmax.f32 %v1287, 0.0
    %v1324 = vmax.f32 %v1289, 0.0
    %v1325 = vmax.f32 %v1292, 0.0
    %v1326 = vmax.f32 %v1294, 0.0
    %v1327 = vmax.f32 %v1297, 0.0
    %v1328 = vmax.f32 %v1299, 0.0
    %v1329 = vmax.f32 %v1302, 0.0
    %v1330 = vmax.f32 %v1304, 0.0
    %v1331 = vmax.f32 %v1307, 0.0
    %v1332 = vmax.f32 %v1309, 0.0
    %v1333 = vmax.f32 %v1312, 0.0
    %v1334 = vmax.f32 %v1314, 0.0
    %v1335 = vmax.f32 %v1317, 0.0
    %v1336 = vmax.f32 %v1319, 0.0
    %v1337 = vpack.c.bf16 %v1322, %v1321
    %v1338 = vpack.c.bf16 %v1324, %v1323
    %v1339 = vpack.c.bf16 %v1326, %v1325
    %v1340 = vpack.c.bf16 %v1328, %v1327
    %v1341 = vpack.c.bf16 %v1330, %v1329
    %v1342 = vpack.c.bf16 %v1332, %v1331
    %v1343 = vpack.c.bf16 %v1334, %v1333
    %v1344 = vpack.c.bf16 %v1336, %v1335
    %1345 = vmatpush.bf16.msra.mxu0 %v1344
    %1346 = vmatpush.bf16.msra.mxu0 %v1343
    %1347 = vmatpush.bf16.msra.mxu0 %v1342
    %1348 = vmatpush.bf16.msra.mxu0 %v1341
    %1349 = vmatpush.bf16.msra.mxu0 %v1340
    %1350 = vmatpush.bf16.msra.mxu0 %v1339
    %1351 = vmatpush.bf16.msra.mxu0 %v1338
    %1352 = vmatpush.bf16.msra.mxu0 %v1337
    %1353 = vmatmul.bf16.gmra.mxu0 %v371
    %v1354 = vpop.f32.mrf.mxu0
    %v1355 = vadd.f32 0.0, %v1354
    %v1356 = vpop.f32.mrf.mxu0
    %v1357 = vadd.f32 0.0, %v1356
    %1358 = vmatmul.bf16.gmra.mxu0 %v372
    %v1359 = vpop.f32.mrf.mxu0
    %v1360 = vadd.f32 0.0, %v1359
    %v1361 = vpop.f32.mrf.mxu0
    %v1362 = vadd.f32 0.0, %v1361
    %1363 = vmatmul.bf16.gmra.mxu0 %v373
    %v1364 = vpop.f32.mrf.mxu0
    %v1365 = vadd.f32 0.0, %v1364
    %v1366 = vpop.f32.mrf.mxu0
    %v1367 = vadd.f32 0.0, %v1366
    %1368 = vmatmul.bf16.gmra.mxu0 %v374
    %v1369 = vpop.f32.mrf.mxu0
    %v1370 = vadd.f32 0.0, %v1369
    %v1371 = vpop.f32.mrf.mxu0
    %v1372 = vadd.f32 0.0, %v1371
    %1373 = vmatmul.bf16.gmra.mxu0 %v375
    %v1374 = vpop.f32.mrf.mxu0
    %v1375 = vadd.f32 0.0, %v1374
    %v1376 = vpop.f32.mrf.mxu0
    %v1377 = vadd.f32 0.0, %v1376
    %1378 = vmatmul.bf16.gmra.mxu0 %v376
    %v1379 = vpop.f32.mrf.mxu0
    %v1380 = vadd.f32 0.0, %v1379
    %v1381 = vpop.f32.mrf.mxu0
    %v1382 = vadd.f32 0.0, %v1381
    %1383 = vmatmul.bf16.gmra.mxu0 %v377
    %v1384 = vpop.f32.mrf.mxu0
    %v1385 = vadd.f32 0.0, %v1384
    %v1386 = vpop.f32.mrf.mxu0
    %v1387 = vadd.f32 0.0, %v1386
    %1388 = vmatmul.bf16.gmra.mxu0 %v378
    %v1389 = vpop.f32.mrf.mxu0
    %v1390 = vadd.f32 0.0, %v1389
    %v1391 = vpop.f32.mrf.mxu0
    %v1392 = vadd.f32 0.0, %v1391
    %1393 = vdwg.mxu0
    %v1394 = vpack.c.bf16 %v1357, %v1355
    %v1395 = vpack.c.bf16 %v1362, %v1360
    %v1396 = vpack.c.bf16 %v1367, %v1365
    %v1397 = vpack.c.bf16 %v1372, %v1370
    %v1398 = vpack.c.bf16 %v1377, %v1375
    %v1399 = vpack.c.bf16 %v1382, %v1380
    %v1400 = vpack.c.bf16 %v1387, %v1385
    %v1401 = vpack.c.bf16 %v1392, %v1390
    %1402 = vmatpush.bf16.msra.mxu0 %v483
    %1403 = vmatpush.bf16.msra.mxu0 %v482
    %1404 = vmatpush.bf16.msra.mxu0 %v481
    %1405 = vmatpush.bf16.msra.mxu0 %v480
    %1406 = vmatpush.bf16.msra.mxu0 %v479
    %1407 = vmatpush.bf16.msra.mxu0 %v478
    %1408 = vmatpush.bf16.msra.mxu0 %v477
    %1409 = vmatpush.bf16.msra.mxu0 %v476
    %1410 = vmatmul.bf16.gmra.mxu0 %v1394
    %v1411 = vpop.f32.mrf.mxu0
    %v1412 = vadd.f32 %v244, %v1411
    %v1413 = vpop.f32.mrf.mxu0
    %v1414 = vadd.f32 %v246, %v1413
    %1415 = vmatmul.bf16.gmra.mxu0 %v1395
    %v1416 = vpop.f32.mrf.mxu0
    %v1417 = vadd.f32 %v249, %v1416
    %v1418 = vpop.f32.mrf.mxu0
    %v1419 = vadd.f32 %v251, %v1418
    %1420 = vmatmul.bf16.gmra.mxu0 %v1396
    %v1421 = vpop.f32.mrf.mxu0
    %v1422 = vadd.f32 %v254, %v1421
    %v1423 = vpop.f32.mrf.mxu0
    %v1424 = vadd.f32 %v256, %v1423
    %1425 = vmatmul.bf16.gmra.mxu0 %v1397
    %v1426 = vpop.f32.mrf.mxu0
    %v1427 = vadd.f32 %v259, %v1426
    %v1428 = vpop.f32.mrf.mxu0
    %v1429 = vadd.f32 %v261, %v1428
    %1430 = vmatmul.bf16.gmra.mxu0 %v1398
    %v1431 = vpop.f32.mrf.mxu0
    %v1432 = vadd.f32 %v264, %v1431
    %v1433 = vpop.f32.mrf.mxu0
    %v1434 = vadd.f32 %v266, %v1433
    %1435 = vmatmul.bf16.gmra.mxu0 %v1399
    %v1436 = vpop.f32.mrf.mxu0
    %v1437 = vadd.f32 %v269, %v1436
    %v1438 = vpop.f32.mrf.mxu0
    %v1439 = vadd.f32 %v271, %v1438
    %1440 = vmatmul.bf16.gmra.mxu0 %v1400
    %v1441 = vpop.f32.mrf.mxu0
    %v1442 = vadd.f32 %v274, %v1441
    %v1443 = vpop.f32.mrf.mxu0
    %v1444 = vadd.f32 %v276, %v1443
    %1445 = vmatmul.bf16.gmra.mxu0 %v1401
    %v1446 = vpop.f32.mrf.mxu0
    %v1447 = vadd.f32 %v279, %v1446
    %v1448 = vpop.f32.mrf.mxu0
    %v1449 = vadd.f32 %v281, %v1448
    %1450 = vdwg.mxu0
    %v1451 = vmax.f32 %v1412, 0.0
    %v1452 = vmax.f32 %v1414, 0.0
    %v1453 = vmax.f32 %v1417, 0.0
    %v1454 = vmax.f32 %v1419, 0.0
    %v1455 = vmax.f32 %v1422, 0.0
    %v1456 = vmax.f32 %v1424, 0.0
    %v1457 = vmax.f32 %v1427, 0.0
    %v1458 = vmax.f32 %v1429, 0.0
    %v1459 = vmax.f32 %v1432, 0.0
    %v1460 = vmax.f32 %v1434, 0.0
    %v1461 = vmax.f32 %v1437, 0.0
    %v1462 = vmax.f32 %v1439, 0.0
    %v1463 = vmax.f32 %v1442, 0.0
    %v1464 = vmax.f32 %v1444, 0.0
    %v1465 = vmax.f32 %v1447, 0.0
    %v1466 = vmax.f32 %v1449, 0.0
    %v1467 = vpack.c.bf16 %v1452, %v1451
    %v1468 = vpack.c.bf16 %v1454, %v1453
    %v1469 = vpack.c.bf16 %v1456, %v1455
    %v1470 = vpack.c.bf16 %v1458, %v1457
    %v1471 = vpack.c.bf16 %v1460, %v1459
    %v1472 = vpack.c.bf16 %v1462, %v1461
    %v1473 = vpack.c.bf16 %v1464, %v1463
    %v1474 = vpack.c.bf16 %v1466, %v1465
    %1475 = vmatpush.bf16.msra.mxu0 %v1474
    %1476 = vmatpush.bf16.msra.mxu0 %v1473
    %1477 = vmatpush.bf16.msra.mxu0 %v1472
    %1478 = vmatpush.bf16.msra.mxu0 %v1471
    %1479 = vmatpush.bf16.msra.mxu0 %v1470
    %1480 = vmatpush.bf16.msra.mxu0 %v1469
    %1481 = vmatpush.bf16.msra.mxu0 %v1468
    %1482 = vmatpush.bf16.msra.mxu0 %v1467
    %1483 = vmatmul.bf16.gmra.mxu0 %v371
    %v1484 = vpop.f32.mrf.mxu0
    %v1485 = vadd.f32 0.0, %v1484
    %v1486 = vpop.f32.mrf.mxu0
    %v1487 = vadd.f32 0.0, %v1486
    %1488 = vmatmul.bf16.gmra.mxu0 %v372
    %v1489 = vpop.f32.mrf.mxu0
    %v1490 = vadd.f32 0.0, %v1489
    %v1491 = vpop.f32.mrf.mxu0
    %v1492 = vadd.f32 0.0, %v1491
    %1493 = vmatmul.bf16.gmra.mxu0 %v373
    %v1494 = vpop.f32.mrf.mxu0
    %v1495 = vadd.f32 0.0, %v1494
    %v1496 = vpop.f32.mrf.mxu0
    %v1497 = vadd.f32 0.0, %v1496
    %1498 = vmatmul.bf16.gmra.mxu0 %v374
    %v1499 = vpop.f32.mrf.mxu0
    %v1500 = vadd.f32 0.0, %v1499
    %v1501 = vpop.f32.mrf.mxu0
    %v1502 = vadd.f32 0.0, %v1501
    %1503 = vmatmul.bf16.gmra.mxu0 %v375
    %v1504 = vpop.f32.mrf.mxu0
    %v1505 = vadd.f32 0.0, %v1504
    %v1506 = vpop.f32.mrf.mxu0
    %v1507 = vadd.f32 0.0, %v1506
    %1508 = vmatmul.bf16.gmra.mxu0 %v376
    %v1509 = vpop.f32.mrf.mxu0
    %v1510 = vadd.f32 0.0, %v1509
    %v1511 = vpop.f32.mrf.mxu0
    %v1512 = vadd.f32 0.0, %v1511
    %1513 = vmatmul.bf16.gmra.mxu0 %v377
    %v1514 = vpop.f32.mrf.mxu0
    %v1515 = vadd.f32 0.0, %v1514
    %v1516 = vpop.f32.mrf.mxu0
    %v1517 = vadd.f32 0.0, %v1516
    %1518 = vmatmul.bf16.gmra.mxu0 %v378
    %v1519 = vpop.f32.mrf.mxu0
    %v1520 = vadd.f32 0.0, %v1519
    %v1521 = vpop.f32.mrf.mxu0
    %v1522 = vadd.f32 0.0, %v1521
    %1523 = vdwg.mxu0
    %v1524 = vpack.c.bf16 %v1487, %v1485
    %v1525 = vpack.c.bf16 %v1492, %v1490
    %v1526 = vpack.c.bf16 %v1497, %v1495
    %v1527 = vpack.c.bf16 %v1502, %v1500
    %v1528 = vpack.c.bf16 %v1507, %v1505
    %v1529 = vpack.c.bf16 %v1512, %v1510
    %v1530 = vpack.c.bf16 %v1517, %v1515
    %v1531 = vpack.c.bf16 %v1522, %v1520
    %1532 = vmatpush.bf16.msra.mxu0 %v483
    %1533 = vmatpush.bf16.msra.mxu0 %v482
    %1534 = vmatpush.bf16.msra.mxu0 %v481
    %1535 = vmatpush.bf16.msra.mxu0 %v480
    %1536 = vmatpush.bf16.msra.mxu0 %v479
    %1537 = vmatpush.bf16.msra.mxu0 %v478
    %1538 = vmatpush.bf16.msra.mxu0 %v477
    %1539 = vmatpush.bf16.msra.mxu0 %v476
    %1540 = vmatmul.bf16.gmra.mxu0 %v1524
    %v1541 = vpop.f32.mrf.mxu0
    %v1542 = vadd.f32 %v244, %v1541
    %v1543 = vpop.f32.mrf.mxu0
    %v1544 = vadd.f32 %v246, %v1543
    %1545 = vmatmul.bf16.gmra.mxu0 %v1525
    %v1546 = vpop.f32.mrf.mxu0
    %v1547 = vadd.f32 %v249, %v1546
    %v1548 = vpop.f32.mrf.mxu0
    %v1549 = vadd.f32 %v251, %v1548
    %1550 = vmatmul.bf16.gmra.mxu0 %v1526
    %v1551 = vpop.f32.mrf.mxu0
    %v1552 = vadd.f32 %v254, %v1551
    %v1553 = vpop.f32.mrf.mxu0
    %v1554 = vadd.f32 %v256, %v1553
    %1555 = vmatmul.bf16.gmra.mxu0 %v1527
    %v1556 = vpop.f32.mrf.mxu0
    %v1557 = vadd.f32 %v259, %v1556
    %v1558 = vpop.f32.mrf.mxu0
    %v1559 = vadd.f32 %v261, %v1558
    %1560 = vmatmul.bf16.gmra.mxu0 %v1528
    %v1561 = vpop.f32.mrf.mxu0
    %v1562 = vadd.f32 %v264, %v1561
    %v1563 = vpop.f32.mrf.mxu0
    %v1564 = vadd.f32 %v266, %v1563
    %1565 = vmatmul.bf16.gmra.mxu0 %v1529
    %v1566 = vpop.f32.mrf.mxu0
    %v1567 = vadd.f32 %v269, %v1566
    %v1568 = vpop.f32.mrf.mxu0
    %v1569 = vadd.f32 %v271, %v1568
    %1570 = vmatmul.bf16.gmra.mxu0 %v1530
    %v1571 = vpop.f32.mrf.mxu0
    %v1572 = vadd.f32 %v274, %v1571
    %v1573 = vpop.f32.mrf.mxu0
    %v1574 = vadd.f32 %v276, %v1573
    %1575 = vmatmul.bf16.gmra.mxu0 %v1531
    %v1576 = vpop.f32.mrf.mxu0
    %v1577 = vadd.f32 %v279, %v1576
    %v1578 = vpop.f32.mrf.mxu0
    %v1579 = vadd.f32 %v281, %v1578
    %1580 = vdwg.mxu0
    %v1581 = vmax.f32 %v1542, 0.0
    %v1582 = vmax.f32 %v1544, 0.0
    %v1583 = vmax.f32 %v1547, 0.0
    %v1584 = vmax.f32 %v1549, 0.0
    %v1585 = vmax.f32 %v1552, 0.0
    %v1586 = vmax.f32 %v1554, 0.0
    %v1587 = vmax.f32 %v1557, 0.0
    %v1588 = vmax.f32 %v1559, 0.0
    %v1589 = vmax.f32 %v1562, 0.0
    %v1590 = vmax.f32 %v1564, 0.0
    %v1591 = vmax.f32 %v1567, 0.0
    %v1592 = vmax.f32 %v1569, 0.0
    %v1593 = vmax.f32 %v1572, 0.0
    %v1594 = vmax.f32 %v1574, 0.0
    %v1595 = vmax.f32 %v1577, 0.0
    %v1596 = vmax.f32 %v1579, 0.0
    %v1597 = vpack.c.bf16 %v1582, %v1581
    %v1598 = vpack.c.bf16 %v1584, %v1583
    %v1599 = vpack.c.bf16 %v1586, %v1585
    %v1600 = vpack.c.bf16 %v1588, %v1587
    %v1601 = vpack.c.bf16 %v1590, %v1589
    %v1602 = vpack.c.bf16 %v1592, %v1591
    %v1603 = vpack.c.bf16 %v1594, %v1593
    %v1604 = vpack.c.bf16 %v1596, %v1595
    %v1605 = vld [vmem:[#allocation10] sm:$0xf]
    %v1606 = vld [vmem:[#allocation10 + $0x4] sm:$0xf]
    %v1607 = vld [vmem:[#allocation10 + $0x8] sm:$0xf]
    %v1608 = vld [vmem:[#allocation10 + $0xc] sm:$0xf]
    %v1609 = vld [vmem:[#allocation10 + $0x10] sm:$0xf]
    %v1610 = vld [vmem:[#allocation10 + $0x14] sm:$0xf]
    %v1611 = vld [vmem:[#allocation10 + $0x18] sm:$0xf]
    %v1612 = vld [vmem:[#allocation10 + $0x1c] sm:$0xf]
    %v1613 = vld [vmem:[#allocation10 + $0x20] sm:$0xf]
    %v1614 = vld [vmem:[#allocation10 + $0x24] sm:$0xf]
    %v1615 = vld [vmem:[#allocation10 + $0x28] sm:$0xf]
    %v1616 = vld [vmem:[#allocation10 + $0x2c] sm:$0xf]
    %v1617 = vld [vmem:[#allocation10 + $0x30] sm:$0xf]
    %v1618 = vld [vmem:[#allocation10 + $0x34] sm:$0xf]
    %v1619 = vld [vmem:[#allocation10 + $0x38] sm:$0xf]
    %v1620 = vld [vmem:[#allocation10 + $0x3c] sm:$0xf]
    %v1637 = vunpack.c.l.b16 %v1605
    %v1638 = vunpack.c.l.b16 %v1606
    %v1639 = vunpack.c.l.b16 %v1607
    %v1640 = vunpack.c.l.b16 %v1608
    %v1641 = vunpack.c.l.b16 %v1609
    %v1642 = vunpack.c.l.b16 %v1610
    %v1643 = vunpack.c.l.b16 %v1611
    %v1644 = vunpack.c.l.b16 %v1612
    %v1645 = vunpack.c.l.b16 %v1613
    %v1646 = vunpack.c.l.b16 %v1614
    %v1647 = vunpack.c.l.b16 %v1615
    %v1648 = vunpack.c.l.b16 %v1616
    %v1649 = vunpack.c.l.b16 %v1617
    %v1650 = vunpack.c.l.b16 %v1618
    %v1651 = vunpack.c.l.b16 %v1619
    %v1652 = vunpack.c.l.b16 %v1620
    %v1653 = vpack.c.b16 %v1638, %v1637
    %v1654 = vpack.c.b16 %v1640, %v1639
    %v1655 = vpack.c.b16 %v1642, %v1641
    %v1656 = vpack.c.b16 %v1644, %v1643
    %v1657 = vpack.c.b16 %v1646, %v1645
    %v1658 = vpack.c.b16 %v1648, %v1647
    %v1659 = vpack.c.b16 %v1650, %v1649
    %v1660 = vpack.c.b16 %v1652, %v1651
    %1669 = vmatpush.bf16.msra.mxu0 %v1660
    %1670 = vmatpush.bf16.msra.mxu0 %v1659
    %1671 = vmatpush.bf16.msra.mxu0 %v1658
    %1672 = vmatpush.bf16.msra.mxu0 %v1657
    %1673 = vmatpush.bf16.msra.mxu0 %v1656
    %1674 = vmatpush.bf16.msra.mxu0 %v1655
    %1675 = vmatpush.bf16.msra.mxu0 %v1654
    %1676 = vmatpush.bf16.msra.mxu0 %v1653
    %1677 = vmatmul.bf16.gmra.mxu0 %v1597
    %v1678 = vpop.f32.mrf.mxu0
    %v1679 = vadd.f32 0.0, %v1678
    %v1680 = vpop.f32.mrf.mxu0
    %v1681 = vadd.f32 0.0, %v1680
    %1682 = vmatmul.bf16.gmra.mxu0 %v1598
    %v1683 = vpop.f32.mrf.mxu0
    %v1684 = vadd.f32 0.0, %v1683
    %v1685 = vpop.f32.mrf.mxu0
    %v1686 = vadd.f32 0.0, %v1685
    %1687 = vmatmul.bf16.gmra.mxu0 %v1599
    %v1688 = vpop.f32.mrf.mxu0
    %v1689 = vadd.f32 0.0, %v1688
    %v1690 = vpop.f32.mrf.mxu0
    %v1691 = vadd.f32 0.0, %v1690
    %1692 = vmatmul.bf16.gmra.mxu0 %v1600
    %v1693 = vpop.f32.mrf.mxu0
    %v1694 = vadd.f32 0.0, %v1693
    %v1695 = vpop.f32.mrf.mxu0
    %v1696 = vadd.f32 0.0, %v1695
    %1697 = vmatmul.bf16.gmra.mxu0 %v1601
    %v1698 = vpop.f32.mrf.mxu0
    %v1699 = vadd.f32 0.0, %v1698
    %v1700 = vpop.f32.mrf.mxu0
    %v1701 = vadd.f32 0.0, %v1700
    %1702 = vmatmul.bf16.gmra.mxu0 %v1602
    %v1703 = vpop.f32.mrf.mxu0
    %v1704 = vadd.f32 0.0, %v1703
    %v1705 = vpop.f32.mrf.mxu0
    %v1706 = vadd.f32 0.0, %v1705
    %1707 = vmatmul.bf16.gmra.mxu0 %v1603
    %v1708 = vpop.f32.mrf.mxu0
    %v1709 = vadd.f32 0.0, %v1708
    %v1710 = vpop.f32.mrf.mxu0
    %v1711 = vadd.f32 0.0, %v1710
    %1712 = vmatmul.bf16.gmra.mxu0 %v1604
    %v1713 = vpop.f32.mrf.mxu0
    %v1714 = vadd.f32 0.0, %v1713
    %v1715 = vpop.f32.mrf.mxu0
    %v1716 = vadd.f32 0.0, %v1715
    %1717 = vdwg.mxu0
    %1718 = vst [vmem:[#allocation11] sm:$0xff] %v1679
    %1719 = vst [vmem:[#allocation11 + $0x8] sm:$0xff] %v1681
    %1720 = vst [vmem:[#allocation11 + $0x10] sm:$0xff] %v1684
    %1721 = vst [vmem:[#allocation11 + $0x18] sm:$0xff] %v1686
    %1722 = vst [vmem:[#allocation11 + $0x20] sm:$0xff] %v1689
    %1723 = vst [vmem:[#allocation11 + $0x28] sm:$0xff] %v1691
    %1724 = vst [vmem:[#allocation11 + $0x30] sm:$0xff] %v1694
    %1725 = vst [vmem:[#allocation11 + $0x38] sm:$0xff] %v1696
    %1726 = vst [vmem:[#allocation11 + $0x40] sm:$0xff] %v1699
    %1727 = vst [vmem:[#allocation11 + $0x48] sm:$0xff] %v1701
    %1728 = vst [vmem:[#allocation11 + $0x50] sm:$0xff] %v1704
    %1729 = vst [vmem:[#allocation11 + $0x58] sm:$0xff] %v1706
    %1730 = vst [vmem:[#allocation11 + $0x60] sm:$0xff] %v1709
    %1731 = vst [vmem:[#allocation11 + $0x68] sm:$0xff] %v1711
    %1732 = vst [vmem:[#allocation11 + $0x70] sm:$0xff] %v1714
    %1733 = vst [vmem:[#allocation11 + $0x78] sm:$0xff] %v1716
    // Predicated region
    $region46: #{tpu_custom_call.1} parent=1 // pred_check
      _
    $region47: #{tpu_custom_call.1} parent=1 // pred_check_branch
      %1735 = sbr.rel (0) target = $region49
    $region48: #{tpu_custom_call.1} parent=1 // pred_region
      %1737 = vsyncadd [#allocation4], 0
      %s1738 = sshll.u32 [#allocation11], 4
      %s1739 = int_to_ptr.vmem [resolvable:$true] %s1738
      %s1740 = sshll.u32 %s6, 4
      %s1741 = int_to_ptr.hbm [resolvable:$true] %s1740
      %1746 = dma.vmem_to_hbm [thread:$0]  %s1739, 2048, %s1741, [#allocation4], 128, 128, 8
    $region49: #{tpu_custom_call.1} parent=1 // pred_fallthru
      _
    // Predicated region
    $region50: #{tpu_custom_call.1} parent=1 // pred_check
      _
    $region51: #{tpu_custom_call.1} parent=1 // pred_check_branch
      %1748 = sbr.rel (0) target = $region53
    $region52: #{tpu_custom_call.1} parent=1 // pred_region
      %1750 = dma.done [#allocation4], 2048
    $region53: #{tpu_custom_call.1} parent=1 // pred_fallthru
      _
    %1751 = vsyncpa [#allocation3], 1
    %1752 = vsyncpa [#allocation6], 1
    %1753 = vsyncpa [#allocation9], 1
    %1754 = vsyncpa [#allocation4], 1

</llo_original>
